<compile_context>
chip_gen: v7x
topology: tpu7x:2x2x1
jax: 0.10.0
libtpu: 0.0.40
codegen_flags: <defaults>
</compile_context>

<pallas_src>
import functools

import jax
import jax.numpy as jnp
from jax.experimental import pallas as pl
from jax.experimental.pallas import tpu as pltpu


# --------------------------------------------------------------------------- #
# Kernels
# --------------------------------------------------------------------------- #
def _sigmoid(logits, approx):
    if approx:
        # exp and the approximate reciprocal both run in the EUP slot, which is
        # otherwise idle here (the VALU handles the blend epilogue).
        return pl.reciprocal(1.0 + jnp.exp(-logits), approx=True)
    return jax.nn.sigmoid(logits)


def _gate_body(xl_ref, xg_ref, w1_ref, w2_ref, b_ref, o_ref, mask_ref,
               approx_sigmoid):
    xl = xl_ref[...]                                   # (TM, E), activation dtype
    xg = xg_ref[...]                                   # (TM, E)
    # cat([xl, xg]) @ W.T  ==  xl @ W[:, :E].T + xg @ W[:, E:].T   (concat-free)
    logits = (
        jnp.dot(xl, w1_ref[...], preferred_element_type=jnp.float32)
        + jnp.dot(xg, w2_ref[...], preferred_element_type=jnp.float32)
        + b_ref[...].astype(jnp.float32)               # (1, TN) broadcast
    )
    if mask_ref is not None:
        # masked_fill(g, mask, 1.0) as an additive +1e9 logit bias: the sigmoid
        # saturates to 1.0 (no compare + broadcast + select).
        logits = logits + mask_ref[...].astype(jnp.float32) * jnp.float32(1e9)
    g = _sigmoid(logits, approx_sigmoid)               # f32 (TM, TN)

    tn = o_ref.shape[-1]
    if tn == xl_ref.shape[-1]:                         # no column tiling
        xl_c, xg_c = xl, xg
    else:                                              # blend only this column slab
        col = pl.program_id(0) * tn
        if tn % 128 == 0:
            col = pl.multiple_of(col, 128)
        xl_c = xl_ref[:, pl.ds(col, tn)]
        xg_c = xg_ref[:, pl.ds(col, tn)]

    # 3-op blend in the activation dtype (bf16 VPU path on v6e/v7x):
    #   out = xg + g * (xl - xg)  ==  xl * g + xg * (1 - g)
    g = g.astype(xl_c.dtype)
    o_ref[...] = (xg_c + g * (xl_c - xg_c)).astype(o_ref.dtype)


def _attn_gate_kernel(xl_ref, xg_ref, w1_ref, w2_ref, b_ref, o_ref, *,
                      approx_sigmoid):
    _gate_body(xl_ref, xg_ref, w1_ref, w2_ref, b_ref, o_ref, None,
               approx_sigmoid)


def _attn_gate_masked_kernel(xl_ref, xg_ref, mask_ref, w1_ref, w2_ref, b_ref,
                             o_ref, *, approx_sigmoid):
    _gate_body(xl_ref, xg_ref, w1_ref, w2_ref, b_ref, o_ref, mask_ref,
               approx_sigmoid)


# --------------------------------------------------------------------------- #
# Tile / VMEM planning
# --------------------------------------------------------------------------- #
def _round_up(x, m):
    return ((x + m - 1) // m) * m


@functools.lru_cache(maxsize=None)
def _vmem_capacity_bytes():
    try:
        cap = getattr(pltpu.get_tpu_info(), "vmem_capacity_bytes", None)
        if cap:
            return int(cap)
    except Exception:
        pass
    return 64 * 1024 * 1024   # conservative fallback (v7x per-core VMEM)


def _plan_tiles(N, E, itemsize, masked, single_buffer_weights, block_rows,
                block_cols):
    pack = max(8, 32 // itemsize)                       # sublane pack: 8 f32 / 16 bf16
    vmem_limit = min(_vmem_capacity_bytes() * 7 // 8, 128 * 1024 * 1024)
    budget = vmem_limit - (2 << 20)                     # headroom for internal scratch

    wbuf_plan = 1 if single_buffer_weights else 2

    # ---- output-E (column) tiling: bound the resident weight footprint ------
    if block_cols is not None:
        if E % block_cols or (block_cols != E and block_cols % 128):
            raise ValueError("block_cols must divide E and be a multiple of 128")
        tn, n_col = block_cols, E // block_cols
    else:
        tn, n_col = E, 1
        w_budget = budget * 2 // 5
        if 2 * wbuf_plan * E * E * itemsize > w_budget and E % 128 == 0:
            for cand in range(2, max(2, E // 128) + 1):
                if E % cand == 0 and (E // cand) % 128 == 0:
                    if 2 * 2 * E * (E // cand) * itemsize <= w_budget:
                        n_col, tn = cand, E // cand
                        break
            # TODO(synk): if no clean divisor exists (odd E), weights stay full
            # width and the row tile shrinks instead.

    # Single buffering only applies when the weight index map is grid-constant.
    single_w = bool(single_buffer_weights and n_col == 1)
    wbuf = 1 if single_w else 2

    # ---- row tiling: biggest tile that actually fits the VMEM budget --------
    fixed = 2 * wbuf * E * tn * itemsize                # w1 + w2 blocks
    fixed += 2 * 8 * tn * 4                             # bias block (sublane-padded)
    per_row = 2 * 2 * E * itemsize                      # xl + xg, double-buffered
    per_row += 2 * tn * itemsize                        # out, double-buffered
    per_row += 4 * tn * 4                               # f32 logits / gate / blend temps
    if masked:
        per_row += 2 * 128 * 4                          # (TM, 1) mask block, lane-padded

    if block_rows is None:
        tm = (budget - fixed) // max(per_row, 1)
    else:
        tm = block_rows
    tm = max(pack, min(2048, (tm // pack) * pack))
    if N > pack:
        # Keep >= 2 row steps so the "parallel" row axis can shard across
        # v7x's two TensorCores even for short sequences.
        tm = min(tm, _round_up(pl.cdiv(N, 2), pack))
    tm = min(tm, _round_up(N, pack))
    n_row = pl.cdiv(N, tm)
    return tm, tn, n_row, n_col, single_w, vmem_limit


# --------------------------------------------------------------------------- #
# Wrappers
# --------------------------------------------------------------------------- #
def prepare_attn_gate_params(weight, bias, dtype=None):
    """One-time (load-time) prep of the nn.Linear(2E -> E) parameters.

    weight: [E, 2E] (PyTorch layout), bias: [E].
    Returns (w1, w2, b2) with w1 = weight[:, :E].T, w2 = weight[:, E:].T,
    b2 = bias[None, :] (f32).  Pass dtype=jnp.bfloat16 to pre-cast the weight
    halves to the activation dtype (bf16-native MXU path).
    """
    E = weight.shape[0]
    if dtype is None:
        dtype = weight.dtype
    w1 = jnp.asarray(weight[:, :E].T, dtype=dtype)
    w2 = jnp.asarray(weight[:, E:].T, dtype=dtype)
    b2 = jnp.asarray(bias, dtype=jnp.float32).reshape(1, E)
    return w1, w2, b2


@functools.partial(
    jax.jit,
    static_argnames=("block_rows", "block_cols", "single_buffer_weights",
                     "approx_sigmoid"))
def _attn_gate_impl(x_local, x_global, ctx_mask, w1, w2, b2, *, block_rows,
                    block_cols, single_buffer_weights, approx_sigmoid):
    S, B, E = x_local.shape
    N = S * B
    compute_dtype = x_local.dtype
    itemsize = jnp.dtype(compute_dtype).itemsize
    masked = ctx_mask is not None

    tm, tn, n_row, n_col, single_w, vmem_limit = _plan_tiles(
        N, E, itemsize, masked, single_buffer_weights, block_rows, block_cols)

    xl2 = x_local.reshape(N, E)                         # row-major bitcast, free
    xg2 = x_global.reshape(N, E)

    row_spec = pl.BlockSpec((tm, E), lambda j, i: (i, 0))
    out_spec = pl.BlockSpec((tm, tn), lambda j, i: (i, j))
    w_kwargs = dict(pipeline_mode=pl.Buffered(1)) if single_w else {}
    w_spec = pl.BlockSpec((E, tn), lambda j, i: (0, j), **w_kwargs)
    b_spec = pl.BlockSpec((1, tn), lambda j, i: (0, j), **w_kwargs)

    if masked:
        # [bsz, seq] -> [seq, bsz] -> [seq*bsz, 1] aligned with flattened rows.
        mask2 = ctx_mask.astype(jnp.float32).T.reshape(N, 1)
        kernel = functools.partial(_attn_gate_masked_kernel,
                                   approx_sigmoid=approx_sigmoid)
        in_specs = [row_spec, row_spec,
                    pl.BlockSpec((tm, 1), lambda j, i: (i, 0)),
                    w_spec, w_spec, b_spec]
        operands = (xl2, xg2, mask2, w1, w2, b2)
    else:
        kernel = functools.partial(_attn_gate_kernel,
                                   approx_sigmoid=approx_sigmoid)
        in_specs = [row_spec, row_spec, w_spec, w_spec, b_spec]
        operands = (xl2, xg2, w1, w2, b2)

    out = pl.pallas_call(
        kernel,
        out_shape=jax.ShapeDtypeStruct((N, E), compute_dtype),
        grid_spec=pltpu.PrefetchScalarGridSpec(
            num_scalar_prefetch=0,
            grid=(n_col, n_row),                        # row axis innermost
            in_specs=in_specs,
            out_specs=out_spec),
        compiler_params=pltpu.CompilerParams(
            dimension_semantics=("parallel", "parallel"),
            vmem_limit_bytes=int(vmem_limit)),
    )(*operands)

    return out.reshape(S, B, E)


_SINGLE_BUFFER_WEIGHTS_OK = None   # probed once; cached for later calls


def attn_gate(x_local, x_global, ctx_mask, w1, w2, b2, *, block_rows=None,
              block_cols=None, approx_sigmoid=True):
    """Pallas AttnGate forward.

    Args:
      x_local:  [seq, bsz, emb]
      x_global: [seq, bsz, emb]
      ctx_mask: [bsz, seq] bool (True -> gate forced to 1.0) or None
      w1, w2, b2: from prepare_attn_gate_params(weight, bias)
    Returns:
      [seq, bsz, emb]
    """
    global _SINGLE_BUFFER_WEIGHTS_OK
    kwargs = dict(block_rows=block_rows, block_cols=block_cols,
                  approx_sigmoid=approx_sigmoid)
    if _SINGLE_BUFFER_WEIGHTS_OK is None:
        try:
            out = _attn_gate_impl(x_local, x_global, ctx_mask, w1, w2, b2,
                                  single_buffer_weights=True, **kwargs)
            _SINGLE_BUFFER_WEIGHTS_OK = True
            return out
        except Exception:
            # pl.Buffered(1) rejected by this runtime -> fall back to the
            # default double-buffered weight specs (any real error re-raises
            # from the retry below).
            _SINGLE_BUFFER_WEIGHTS_OK = False
    return _attn_gate_impl(x_local, x_global, ctx_mask, w1, w2, b2,
                           single_buffer_weights=_SINGLE_BUFFER_WEIGHTS_OK,
                           **kwargs)


# --------------------------------------------------------------------------- #
# Reference + self-test
# --------------------------------------------------------------------------- #
def _reference(x_local, x_global, ctx_mask, weight, bias):
    """Pure-JAX reference mirroring the PyTorch forward."""
    g = jnp.concatenate([x_local, x_global], axis=-1) @ weight.T + bias
    g = jax.nn.sigmoid(g)
    if ctx_mask is not None:
        m = jnp.transpose(ctx_mask, (1, 0))[..., None]  # [seq, bsz, 1]
        g = jnp.where(m, 1.0, g)
    return x_local * g + x_global * (1.0 - g)


if __name__ == "__main__":
    seq, bsz, emb = 8, 2, 32

    key = jax.random.PRNGKey(0)
    k_xl, k_xg, k_m, k_w, k_b = jax.random.split(key, 5)

    x_local = jax.random.normal(k_xl, (seq, bsz, emb), jnp.float32)
    x_global = jax.random.normal(k_xg, (seq, bsz, emb), jnp.float32)
    ctx_mask = jax.random.bernoulli(k_m, 0.25, (bsz, seq))     # bool [bsz, seq]

    # Deterministic nn.Linear(2E, E)-style init: U(-1/sqrt(fan_in), 1/sqrt(fan_in)).
    fan_in = 2 * emb
    bound = 1.0 / (fan_in ** 0.5)
    weight = jax.random.uniform(k_w, (emb, 2 * emb), jnp.float32, -bound, bound)
    bias = jax.random.uniform(k_b, (emb,), jnp.float32, -bound, bound)

    # Hoisted (one-time) parameter prep.
    w1, w2, b2 = prepare_attn_gate_params(weight, bias)

    # Masked path, approximate (EUP) sigmoid.
    out = jax.block_until_ready(attn_gate(x_local, x_global, ctx_mask, w1, w2, b2))
    ref = _reference(x_local, x_global, ctx_mask, weight, bias)
    assert out.shape == (seq, bsz, emb)
    assert jnp.allclose(out, ref, atol=5e-3, rtol=5e-3), "mismatch (masked, approx)"

    # Masked path, exact sigmoid (tight tolerance correctness check).
    out_ex = jax.block_until_ready(
        attn_gate(x_local, x_global, ctx_mask, w1, w2, b2, approx_sigmoid=False))
    assert jnp.allclose(out_ex, ref, atol=1e-5, rtol=1e-5), "mismatch (masked, exact)"

    # Unmasked path (mask-free kernel variant).
    out_nm = jax.block_until_ready(attn_gate(x_local, x_global, None, w1, w2, b2))
    ref_nm = _reference(x_local, x_global, None, weight, bias)
    assert jnp.allclose(out_nm, ref_nm, atol=5e-3, rtol=5e-3), "mismatch (no mask)"

    # Shapes that do not divide the row tile (exercises last-block clipping,
    # which replaced the jnp.pad / out[:N] copies).
    seq2, bsz2 = 7, 3
    xl_o = jax.random.normal(k_xl, (seq2, bsz2, emb), jnp.float32)
    xg_o = jax.random.normal(k_xg, (seq2, bsz2, emb), jnp.float32)
    m_o = jax.random.bernoulli(k_m, 0.5, (bsz2, seq2))
    out_o = jax.block_until_ready(attn_gate(xl_o, xg_o, m_o, w1, w2, b2))
    ref_o = _reference(xl_o, xg_o, m_o, weight, bias)
    assert jnp.allclose(out_o, ref_o, atol=5e-3, rtol=5e-3), "mismatch (ragged rows)"

    print("KERNEL_OK")
</pallas_src>

<mosaic_0001>
module attributes {stable_mosaic.version = 11 : i64} {
  func.func @_attn_gate_masked_kernel(%arg0: i32, %arg1: i32, %arg2: memref<8x32xf32, #tpu.memory_space<vmem>>, %arg3: memref<8x32xf32, #tpu.memory_space<vmem>>, %arg4: memref<8x1xf32, #tpu.memory_space<vmem>>, %arg5: memref<32x32xf32, #tpu.memory_space<vmem>>, %arg6: memref<32x32xf32, #tpu.memory_space<vmem>>, %arg7: memref<1x32xf32, #tpu.memory_space<vmem>>, %arg8: memref<8x32xf32, #tpu.memory_space<vmem>>) attributes {dimension_semantics = [#tpu.dimension_semantics<parallel>, #tpu.dimension_semantics<parallel>], iteration_bounds = array<i64: 1, 2>, scalar_prefetch = 0 : i64, scratch_operands = 0 : i64, tpu.core_type = #tpu.core_type<tc>, window_params = [{transform_indices = @transform_0, window_bounds = array<i64: 8, 32>}, {transform_indices = @transform_1, window_bounds = array<i64: 8, 32>}, {transform_indices = @transform_2, window_bounds = array<i64: 8, 1>}, {pipeline_mode = #tpu.pipeline_mode<synchronous>, transform_indices = @transform_3, window_bounds = array<i64: 32, 32>}, {pipeline_mode = #tpu.pipeline_mode<synchronous>, transform_indices = @transform_4, window_bounds = array<i64: 32, 32>}, {pipeline_mode = #tpu.pipeline_mode<synchronous>, transform_indices = @transform_5, window_bounds = array<i64: 1, 32>}, {transform_indices = @transform_6, window_bounds = array<i64: 8, 32>}]} {
    %c0 = arith.constant 0 : index
    %c0_0 = arith.constant 0 : index
    %0 = vector.load %arg2[%c0, %c0_0] : memref<8x32xf32, #tpu.memory_space<vmem>>, vector<8x32xf32>
    %c0_1 = arith.constant 0 : index
    %c0_2 = arith.constant 0 : index
    %1 = vector.load %arg3[%c0_1, %c0_2] : memref<8x32xf32, #tpu.memory_space<vmem>>, vector<8x32xf32>
    %c0_3 = arith.constant 0 : index
    %c0_4 = arith.constant 0 : index
    %2 = vector.load %arg5[%c0_3, %c0_4] : memref<32x32xf32, #tpu.memory_space<vmem>>, vector<32x32xf32>
    %cst = arith.constant dense<0.000000e+00> : vector<8x32xf32>
    %3 = tpu.matmul %0, %2, %cst {dimension_numbers = #tpu.dot_dimension_numbers<[1], [0], [0], [1], [0, 0, 1, 1], [], []>} : vector<8x32xf32>, vector<32x32xf32>, vector<8x32xf32> -> vector<8x32xf32>
    %c0_5 = arith.constant 0 : index
    %c0_6 = arith.constant 0 : index
    %4 = vector.load %arg6[%c0_5, %c0_6] : memref<32x32xf32, #tpu.memory_space<vmem>>, vector<32x32xf32>
    %cst_7 = arith.constant dense<0.000000e+00> : vector<8x32xf32>
    %5 = tpu.matmul %1, %4, %cst_7 {dimension_numbers = #tpu.dot_dimension_numbers<[1], [0], [0], [1], [0, 0, 1, 1], [], []>} : vector<8x32xf32>, vector<32x32xf32>, vector<8x32xf32> -> vector<8x32xf32>
    %6 = arith.addf %3, %5 : vector<8x32xf32>
    %c0_8 = arith.constant 0 : index
    %c0_9 = arith.constant 0 : index
    %7 = vector.load %arg7[%c0_8, %c0_9] : memref<1x32xf32, #tpu.memory_space<vmem>>, vector<1x32xf32>
    %8 = vector.broadcast %7 : vector<1x32xf32> to vector<8x32xf32>
    %9 = arith.addf %6, %8 : vector<8x32xf32>
    %c0_10 = arith.constant 0 : index
    %c0_11 = arith.constant 0 : index
    %10 = vector.load %arg4[%c0_10, %c0_11] : memref<8x1xf32, #tpu.memory_space<vmem>>, vector<8x1xf32>
    %cst_12 = arith.constant 1.000000e+09 : f32
    %11 = vector.broadcast %cst_12 : f32 to vector<8x1xf32>
    %12 = arith.mulf %10, %11 : vector<8x1xf32>
    %13 = vector.broadcast %12 : vector<8x1xf32> to vector<8x32xf32>
    %14 = arith.addf %9, %13 : vector<8x32xf32>
    %cst_13 = arith.constant 0.000000e+00 : f32
    %15 = vector.broadcast %cst_13 : f32 to vector<8x32xf32>
    %16 = arith.subf %15, %14 : vector<8x32xf32>
    %17 = math.exp %16 : vector<8x32xf32>
    %cst_14 = arith.constant 1.000000e+00 : f32
    %18 = vector.broadcast %cst_14 : f32 to vector<8x32xf32>
    %19 = arith.addf %18, %17 : vector<8x32xf32>
    %20 = tpu.reciprocal %19 {approx = true} : vector<8x32xf32> -> vector<8x32xf32>
    %21 = arith.subf %0, %1 : vector<8x32xf32>
    %22 = arith.mulf %20, %21 : vector<8x32xf32>
    %23 = arith.addf %1, %22 : vector<8x32xf32>
    %c0_15 = arith.constant 0 : index
    %c0_16 = arith.constant 0 : index
    %24 = vector.load %arg8[%c0_15, %c0_16] : memref<8x32xf32, #tpu.memory_space<vmem>>, vector<8x32xf32>
    tpu.vector_store %arg8[%c0_15, %c0_16], %23 {strides = array<i32>} : memref<8x32xf32, #tpu.memory_space<vmem>>, vector<8x32xf32>,
    return
  }
  func.func @transform_0(%arg0: i32, %arg1: i32) -> (i32, i32) {
    %c0_i32 = arith.constant 0 : i32
    %c0_i32_0 = arith.constant 0 : i32
    return %arg1, %c0_i32 : i32, i32
  }
  func.func @transform_1(%arg0: i32, %arg1: i32) -> (i32, i32) {
    %c0_i32 = arith.constant 0 : i32
    %c0_i32_0 = arith.constant 0 : i32
    return %arg1, %c0_i32 : i32, i32
  }
  func.func @transform_2(%arg0: i32, %arg1: i32) -> (i32, i32) {
    %c0_i32 = arith.constant 0 : i32
    %c0_i32_0 = arith.constant 0 : i32
    return %arg1, %c0_i32 : i32, i32
  }
  func.func @transform_3(%arg0: i32, %arg1: i32) -> (i32, i32) {
    %c0_i32 = arith.constant 0 : i32
    %c0_i32_0 = arith.constant 0 : i32
    return %c0_i32, %arg0 : i32, i32
  }
  func.func @transform_4(%arg0: i32, %arg1: i32) -> (i32, i32) {
    %c0_i32 = arith.constant 0 : i32
    %c0_i32_0 = arith.constant 0 : i32
    return %c0_i32, %arg0 : i32, i32
  }
  func.func @transform_5(%arg0: i32, %arg1: i32) -> (i32, i32) {
    %c0_i32 = arith.constant 0 : i32
    %c0_i32_0 = arith.constant 0 : i32
    return %c0_i32, %arg0 : i32, i32
  }
  func.func @transform_6(%arg0: i32, %arg1: i32) -> (i32, i32) {
    %c0_i32 = arith.constant 0 : i32
    return %arg1, %arg0 : i32, i32
  }
}

module attributes {stable_mosaic.version = 11 : i64} {
  func.func @_attn_gate_masked_kernel(%arg0: i32, %arg1: i32, %arg2: memref<8x32xf32, #tpu.memory_space<vmem>>, %arg3: memref<8x32xf32, #tpu.memory_space<vmem>>, %arg4: memref<8x1xf32, #tpu.memory_space<vmem>>, %arg5: memref<32x32xf32, #tpu.memory_space<vmem>>, %arg6: memref<32x32xf32, #tpu.memory_space<vmem>>, %arg7: memref<1x32xf32, #tpu.memory_space<vmem>>, %arg8: memref<8x32xf32, #tpu.memory_space<vmem>>) attributes {dimension_semantics = [#tpu.dimension_semantics<parallel>, #tpu.dimension_semantics<parallel>], iteration_bounds = array<i64: 1, 2>, scalar_prefetch = 0 : i64, scratch_operands = 0 : i64, tpu.core_type = #tpu.core_type<tc>, window_params = [{transform_indices = @transform_0, window_bounds = array<i64: 8, 32>}, {transform_indices = @transform_1, window_bounds = array<i64: 8, 32>}, {transform_indices = @transform_2, window_bounds = array<i64: 8, 1>}, {transform_indices = @transform_3, window_bounds = array<i64: 32, 32>}, {transform_indices = @transform_4, window_bounds = array<i64: 32, 32>}, {transform_indices = @transform_5, window_bounds = array<i64: 1, 32>}, {transform_indices = @transform_6, window_bounds = array<i64: 8, 32>}]} {
    %c0 = arith.constant 0 : index
    %c0_0 = arith.constant 0 : index
    %0 = vector.load %arg2[%c0, %c0_0] : memref<8x32xf32, #tpu.memory_space<vmem>>, vector<8x32xf32>
    %c0_1 = arith.constant 0 : index
    %c0_2 = arith.constant 0 : index
    %1 = vector.load %arg3[%c0_1, %c0_2] : memref<8x32xf32, #tpu.memory_space<vmem>>, vector<8x32xf32>
    %c0_3 = arith.constant 0 : index
    %c0_4 = arith.constant 0 : index
    %2 = vector.load %arg5[%c0_3, %c0_4] : memref<32x32xf32, #tpu.memory_space<vmem>>, vector<32x32xf32>
    %cst = arith.constant dense<0.000000e+00> : vector<8x32xf32>
    %3 = tpu.matmul %0, %2, %cst {dimension_numbers = #tpu.dot_dimension_numbers<[1], [0], [0], [1], [0, 0, 1, 1], [], []>} : vector<8x32xf32>, vector<32x32xf32>, vector<8x32xf32> -> vector<8x32xf32>
    %c0_5 = arith.constant 0 : index
    %c0_6 = arith.constant 0 : index
    %4 = vector.load %arg6[%c0_5, %c0_6] : memref<32x32xf32, #tpu.memory_space<vmem>>, vector<32x32xf32>
    %cst_7 = arith.constant dense<0.000000e+00> : vector<8x32xf32>
    %5 = tpu.matmul %1, %4, %cst_7 {dimension_numbers = #tpu.dot_dimension_numbers<[1], [0], [0], [1], [0, 0, 1, 1], [], []>} : vector<8x32xf32>, vector<32x32xf32>, vector<8x32xf32> -> vector<8x32xf32>
    %6 = arith.addf %3, %5 : vector<8x32xf32>
    %c0_8 = arith.constant 0 : index
    %c0_9 = arith.constant 0 : index
    %7 = vector.load %arg7[%c0_8, %c0_9] : memref<1x32xf32, #tpu.memory_space<vmem>>, vector<1x32xf32>
    %8 = vector.broadcast %7 : vector<1x32xf32> to vector<8x32xf32>
    %9 = arith.addf %6, %8 : vector<8x32xf32>
    %c0_10 = arith.constant 0 : index
    %c0_11 = arith.constant 0 : index
    %10 = vector.load %arg4[%c0_10, %c0_11] : memref<8x1xf32, #tpu.memory_space<vmem>>, vector<8x1xf32>
    %cst_12 = arith.constant 1.000000e+09 : f32
    %11 = vector.broadcast %cst_12 : f32 to vector<8x1xf32>
    %12 = arith.mulf %10, %11 : vector<8x1xf32>
    %13 = vector.broadcast %12 : vector<8x1xf32> to vector<8x32xf32>
    %14 = arith.addf %9, %13 : vector<8x32xf32>
    %cst_13 = arith.constant 0.000000e+00 : f32
    %15 = vector.broadcast %cst_13 : f32 to vector<8x32xf32>
    %16 = arith.subf %15, %14 : vector<8x32xf32>
    %17 = math.exp %16 : vector<8x32xf32>
    %cst_14 = arith.constant 1.000000e+00 : f32
    %18 = vector.broadcast %cst_14 : f32 to vector<8x32xf32>
    %19 = arith.addf %18, %17 : vector<8x32xf32>
    %20 = tpu.reciprocal %19 {approx = true} : vector<8x32xf32> -> vector<8x32xf32>
    %21 = arith.subf %0, %1 : vector<8x32xf32>
    %22 = arith.mulf %20, %21 : vector<8x32xf32>
    %23 = arith.addf %1, %22 : vector<8x32xf32>
    %c0_15 = arith.constant 0 : index
    %c0_16 = arith.constant 0 : index
    %24 = vector.load %arg8[%c0_15, %c0_16] : memref<8x32xf32, #tpu.memory_space<vmem>>, vector<8x32xf32>
    tpu.vector_store %arg8[%c0_15, %c0_16], %23 {strides = array<i32>} : memref<8x32xf32, #tpu.memory_space<vmem>>, vector<8x32xf32>,
    return
  }
  func.func @transform_0(%arg0: i32, %arg1: i32) -> (i32, i32) {
    %c0_i32 = arith.constant 0 : i32
    %c0_i32_0 = arith.constant 0 : i32
    return %arg1, %c0_i32 : i32, i32
  }
  func.func @transform_1(%arg0: i32, %arg1: i32) -> (i32, i32) {
    %c0_i32 = arith.constant 0 : i32
    %c0_i32_0 = arith.constant 0 : i32
    return %arg1, %c0_i32 : i32, i32
  }
  func.func @transform_2(%arg0: i32, %arg1: i32) -> (i32, i32) {
    %c0_i32 = arith.constant 0 : i32
    %c0_i32_0 = arith.constant 0 : i32
    return %arg1, %c0_i32 : i32, i32
  }
  func.func @transform_3(%arg0: i32, %arg1: i32) -> (i32, i32) {
    %c0_i32 = arith.constant 0 : i32
    %c0_i32_0 = arith.constant 0 : i32
    return %c0_i32, %arg0 : i32, i32
  }
  func.func @transform_4(%arg0: i32, %arg1: i32) -> (i32, i32) {
    %c0_i32 = arith.constant 0 : i32
    %c0_i32_0 = arith.constant 0 : i32
    return %c0_i32, %arg0 : i32, i32
  }
  func.func @transform_5(%arg0: i32, %arg1: i32) -> (i32, i32) {
    %c0_i32 = arith.constant 0 : i32
    %c0_i32_0 = arith.constant 0 : i32
    return %c0_i32, %arg0 : i32, i32
  }
  func.func @transform_6(%arg0: i32, %arg1: i32) -> (i32, i32) {
    %c0_i32 = arith.constant 0 : i32
    return %arg1, %arg0 : i32, i32
  }
}

</mosaic_0001>

<llo_original>
// kernel: _attn_gate_impl.1
$region0: #{_attn_gate_impl.1}
  #allocation0 [shape = 'u32[]', space=smem, size = 0x4, offset = 0x4, fixed_abs, tag = 'smem constant byte address 0x4 - core index']
  #allocation1 [shape = 'u32[144,128]{1,0:T(1,128)}', space=vmem, size = 0x12000, scoped, tag = 'internal scratch']
  %s0 = inlined_call_operand.vmem [shape: f32[16,32], index: 0, kind: input, shape index: {}]
  %s1 = inlined_call_operand.hbm [shape: f32[16,32], index: 1, kind: input, shape index: {}]
  %s2 = inlined_call_operand.vmem [shape: f32[16,1], index: 2, kind: input, shape index: {}]
  %s3 = inlined_call_operand.vmem [shape: f32[32,32], index: 3, kind: input, shape index: {}]
  %s4 = inlined_call_operand.hbm [shape: f32[32,32], index: 4, kind: input, shape index: {}]
  %s5 = inlined_call_operand.vmem [shape: f32[1,32], index: 5, kind: input, shape index: {}]
  %s6 = inlined_call_operand.hbm [shape: f32[16,32], index: 6, kind: output, shape index: {}]
  %s7 = sld [smem:[#allocation0]]
  $region65: #{_attn_gate_impl.1} parent=0
    _
  %s9 = ssub.s32 1, %s7
  %s10 = scalar_select 0, %s9, %s7
  $region1: #{_attn_gate_impl.1} parent=0
    #allocation2 [shape = 'u8[8192]{0}', space=vmem, size = 0x2000, scoped, tag = 'input window, operand 1']
    #allocation3 [shape = 's32[2]{0}', space=sflag, size = 0x8, scoped, tag = 'scoped memory for _attn_gate_impl.1']
    #allocation4 [shape = 's32[2]{0}', space=sflag, size = 0x8, scoped, tag = 'scoped memory for _attn_gate_impl.1']
    #allocation5 [shape = 'u8[16384]{0}', space=vmem, size = 0x4000, scoped, tag = 'input window, operand 4, single buffered']
    #allocation6 [shape = 's32[1]{0}', space=sflag, size = 0x4, scoped, tag = 'scoped memory for _attn_gate_impl.1']
    #allocation7 [shape = 'u8[8192]{0}', space=vmem, size = 0x2000, scoped, tag = 'output window, operand 0']
    %11 = vsyncpa [#allocation3], 0
    %s12 = scalar_lea.sflag [#allocation3], 1
    %13 = vsyncpa %s12, 0
    %14 = vsyncpa [#allocation6], 0
    %15 = vsyncpa [#allocation4], 0
    %s16 = scalar_lea.sflag [#allocation4], 1
    %17 = vsyncpa %s16, 0
    loop: start=0, step=1, limit=4
    $region2: #{_attn_gate_impl.1} parent=1 // loop_pre_header
      _
    $region3: #{_attn_gate_impl.1} parent=1 // loop_header
      %s19 = sphi 0, %s23
      %p20 = scmp.ge.s32.totalorder %s19, 4
      %s26 = sphi 0, %s38
      %s27 = sphi 0, %s34
      %s28 = sphi 0, %s26
      %s29 = sphi 0, %s27
      %s30 = sphi 0, %s28
      %s31 = sphi 0, %s29
      %s41 = sphi 0, %s43
      %s44 = sphi 0, %s41
      %s45 = sphi 0, %s44
      %s61 = sphi 0, %s45
      %s67 = sphi 0, %s69
      %s70 = sphi 0, %s67
      %s71 = sphi 0, %s70
      %s87 = sphi 0, %s71
      %s93 = sphi 0, %s95
      %s96 = sphi 0, %s93
      %s97 = sphi 0, %s96
      %s113 = sphi 0, %s97
      %s119 = sphi 0, %s121
      %s122 = sphi 0, %s119
      %s123 = sphi 0, %s122
      %s139 = sphi 0, %s123
      %s145 = sphi 0, %s147
      %s148 = sphi 0, %s145
      %s149 = sphi 0, %s148
      %s165 = sphi 0, %s149
      %s171 = sphi 0, %s173
      %s174 = sphi 0, %s171
      %s175 = sphi 0, %s174
      %s191 = sphi 0, %s175
      %s199 = sphi 0, %s201
      %s202 = sphi 0, %s199
      %s203 = sphi 0, %s202
      %s219 = sphi 0, %s203
    $region4: #{_attn_gate_impl.1} parent=1 // loop_header_branch
      %22 = sbr.rel (%p20) target = $region8
    $region5: #{_attn_gate_impl.1} parent=1 // loop_body
      %s24 = ssub.s32 %s19, 1
      %s25 = ssub.s32 %s19, 2
      %s32 = sadd.s32 1, %s27
      %p33 = scmp.ge.s32.totalorder %s32, 2
      %s34 = scalar_select %p33, 0, %s32
      %s35 = sadd.s32 1, %s26
      %s36 = scalar_select %p33, %s35, %s26
      %p37 = scmp.ge.s32.totalorder %s36, 1
      %s38 = scalar_select %p37, 0, %s36
      %s39 = ssub.s32 %s27, %s34
      %p40 = scmp.eq.s32.totalorder %s39, 0
      %s42 = sadd.s32 %s41, 1
      %s43 = scalar_select %p40, %s41, %s42
      %p46 = pneg %p40
      %p47 = scmp.eq.s32.totalorder %s19, 1
      %p48 = por %p46, %p47
      %p49 = scmp.ne.s32.totalorder %s41, %s44
      %p50 = scmp.eq.s32.totalorder %s19, 0
      %p51 = por %p49, %p50
      %p52 = scmp.ne.s32.totalorder %s41, %s44
      %p53 = scmp.eq.s32.totalorder %s24, 1
      %p54 = por %p52, %p53
      %p55 = scmp.ne.s32.totalorder %s44, %s45
      %p56 = scmp.eq.s32.totalorder %s24, 0
      %p57 = por %p55, %p56
      %p58 = scmp.ne.s32.totalorder %s44, %s45
      %p59 = scmp.eq.s32.totalorder %s25, 1
      %p60 = por %p58, %p59
      %p62 = scmp.ne.s32.totalorder %s45, %s61
      %p63 = scmp.eq.s32.totalorder %s25, 0
      %p64 = por %p62, %p63
      %s65 = ssub.s32 %s27, %s34
      %p66 = scmp.eq.s32.totalorder %s65, 0
      %s68 = sadd.s32 %s67, 1
      %s69 = scalar_select %p66, %s67, %s68
      %p72 = pneg %p66
      %p73 = scmp.eq.s32.totalorder %s19, 1
      %p74 = por %p72, %p73
      %p75 = scmp.ne.s32.totalorder %s67, %s70
      %p76 = scmp.eq.s32.totalorder %s19, 0
      %p77 = por %p75, %p76
      %p78 = scmp.ne.s32.totalorder %s67, %s70
      %p79 = scmp.eq.s32.totalorder %s24, 1
      %p80 = por %p78, %p79
      %p81 = scmp.ne.s32.totalorder %s70, %s71
      %p82 = scmp.eq.s32.totalorder %s24, 0
      %p83 = por %p81, %p82
      %p84 = scmp.ne.s32.totalorder %s70, %s71
      %p85 = scmp.eq.s32.totalorder %s25, 1
      %p86 = por %p84, %p85
      %p88 = scmp.ne.s32.totalorder %s71, %s87
      %p89 = scmp.eq.s32.totalorder %s25, 0
      %p90 = por %p88, %p89
      %s91 = ssub.s32 %s27, %s34
      %p92 = scmp.eq.s32.totalorder %s91, 0
      %s94 = sadd.s32 %s93, 1
      %s95 = scalar_select %p92, %s93, %s94
      %p98 = pneg %p92
      %p99 = scmp.eq.s32.totalorder %s19, 1
      %p100 = por %p98, %p99
      %p101 = scmp.ne.s32.totalorder %s93, %s96
      %p102 = scmp.eq.s32.totalorder %s19, 0
      %p103 = por %p101, %p102
      %p104 = scmp.ne.s32.totalorder %s93, %s96
      %p105 = scmp.eq.s32.totalorder %s24, 1
      %p106 = por %p104, %p105
      %p107 = scmp.ne.s32.totalorder %s96, %s97
      %p108 = scmp.eq.s32.totalorder %s24, 0
      %p109 = por %p107, %p108
      %p110 = scmp.ne.s32.totalorder %s96, %s97
      %p111 = scmp.eq.s32.totalorder %s25, 1
      %p112 = por %p110, %p111
      %p114 = scmp.ne.s32.totalorder %s97, %s113
      %p115 = scmp.eq.s32.totalorder %s25, 0
      %p116 = por %p114, %p115
      %s117 = ssub.s32 %s26, %s38
      %p118 = scmp.eq.s32.totalorder %s117, 0
      %s120 = sadd.s32 %s119, 1
      %s121 = scalar_select %p118, %s119, %s120
      %p124 = pneg %p118
      %p125 = scmp.eq.s32.totalorder %s19, 1
      %p126 = por %p124, %p125
      %p127 = scmp.ne.s32.totalorder %s119, %s122
      %p128 = scmp.eq.s32.totalorder %s19, 0
      %p129 = por %p127, %p128
      %p130 = scmp.ne.s32.totalorder %s119, %s122
      %p131 = scmp.eq.s32.totalorder %s24, 1
      %p132 = por %p130, %p131
      %p133 = scmp.ne.s32.totalorder %s122, %s123
      %p134 = scmp.eq.s32.totalorder %s24, 0
      %p135 = por %p133, %p134
      %p136 = scmp.ne.s32.totalorder %s122, %s123
      %p137 = scmp.eq.s32.totalorder %s25, 1
      %p138 = por %p136, %p137
      %p140 = scmp.ne.s32.totalorder %s123, %s139
      %p141 = scmp.eq.s32.totalorder %s25, 0
      %p142 = por %p140, %p141
      %s143 = ssub.s32 %s26, %s38
      %p144 = scmp.eq.s32.totalorder %s143, 0
      %s146 = sadd.s32 %s145, 1
      %s147 = scalar_select %p144, %s145, %s146
      %p150 = pneg %p144
      %p151 = scmp.eq.s32.totalorder %s19, 1
      %p152 = por %p150, %p151
      %p153 = scmp.ne.s32.totalorder %s145, %s148
      %p154 = scmp.eq.s32.totalorder %s19, 0
      %p155 = por %p153, %p154
      %p156 = scmp.ne.s32.totalorder %s145, %s148
      %p157 = scmp.eq.s32.totalorder %s24, 1
      %p158 = por %p156, %p157
      %p159 = scmp.ne.s32.totalorder %s148, %s149
      %p160 = scmp.eq.s32.totalorder %s24, 0
      %p161 = por %p159, %p160
      %p162 = scmp.ne.s32.totalorder %s148, %s149
      %p163 = scmp.eq.s32.totalorder %s25, 1
      %p164 = por %p162, %p163
      %p166 = scmp.ne.s32.totalorder %s149, %s165
      %p167 = scmp.eq.s32.totalorder %s25, 0
      %p168 = por %p166, %p167
      %s169 = ssub.s32 %s26, %s38
      %p170 = scmp.eq.s32.totalorder %s169, 0
      %s172 = sadd.s32 %s171, 1
      %s173 = scalar_select %p170, %s171, %s172
      %p176 = pneg %p170
      %p177 = scmp.eq.s32.totalorder %s19, 1
      %p178 = por %p176, %p177
      %p179 = scmp.ne.s32.totalorder %s171, %s174
      %p180 = scmp.eq.s32.totalorder %s19, 0
      %p181 = por %p179, %p180
      %p182 = scmp.ne.s32.totalorder %s171, %s174
      %p183 = scmp.eq.s32.totalorder %s24, 1
      %p184 = por %p182, %p183
      %p185 = scmp.ne.s32.totalorder %s174, %s175
      %p186 = scmp.eq.s32.totalorder %s24, 0
      %p187 = por %p185, %p186
      %p188 = scmp.ne.s32.totalorder %s174, %s175
      %p189 = scmp.eq.s32.totalorder %s25, 1
      %p190 = por %p188, %p189
      %p192 = scmp.ne.s32.totalorder %s175, %s191
      %p193 = scmp.eq.s32.totalorder %s25, 0
      %p194 = por %p192, %p193
      %s195 = ssub.s32 %s27, %s34
      %s196 = ssub.s32 %s26, %s38
      %s197 = sor.u32 %s195, %s196
      %p198 = scmp.eq.s32.totalorder %s197, 0
      %s200 = sadd.s32 %s199, 1
      %s201 = scalar_select %p198, %s199, %s200
      %p204 = pneg %p198
      %p205 = scmp.eq.s32.totalorder %s19, 1
      %p206 = por %p204, %p205
      %p207 = scmp.ne.s32.totalorder %s199, %s202
      %p208 = scmp.eq.s32.totalorder %s19, 0
      %p209 = por %p207, %p208
      %p210 = scmp.ne.s32.totalorder %s199, %s202
      %p211 = scmp.eq.s32.totalorder %s24, 1
      %p212 = por %p210, %p211
      %p213 = scmp.ne.s32.totalorder %s202, %s203
      %p214 = scmp.eq.s32.totalorder %s24, 0
      %p215 = por %p213, %p214
      %p216 = scmp.ne.s32.totalorder %s202, %s203
      %p217 = scmp.eq.s32.totalorder %s25, 1
      %p218 = por %p216, %p217
      %p220 = scmp.ne.s32.totalorder %s203, %s219
      %p221 = scmp.eq.s32.totalorder %s25, 0
      %p222 = por %p220, %p221
      %p223 = scmp.le.s32.totalorder 1, %s19
      %p224 = scmp.lt.s32.totalorder %s19, 3
      %p225 = pnand %p223, %p224
      %p226 = pneg %p225
      // Predicated region
      $region9: #{_attn_gate_impl.1} parent=5 // pred_check
        _
      $region10: #{_attn_gate_impl.1} parent=5 // pred_check_branch
        %228 = sbr.rel (%p225) target = $region12
      $region11: #{_attn_gate_impl.1} parent=5 // pred_region
        %s229 = ssub.s32 %s19, 1
        // Predicated region
        $region13: #{_attn_gate_impl.1} parent=11 // pred_check
          %p230 = pneg %p135
        $region14: #{_attn_gate_impl.1} parent=11 // pred_check_branch
          %232 = sbr.rel (%p230) target = $region16
        $region15: #{_attn_gate_impl.1} parent=11 // pred_region
          %p233 = scmp.lt.s32.totalorder %s28, 0
          %s234 = scalar_select %p233, %s28, 0
          %s235 = smul.addr %s234, 8
          %s236 = scalar_lea.vmem %s3, %s235
        $region16: #{_attn_gate_impl.1} parent=11 // pred_fallthru
          _
        // Predicated region
        $region17: #{_attn_gate_impl.1} parent=11 // pred_check
          %p237 = pneg %p161
        $region18: #{_attn_gate_impl.1} parent=11 // pred_check_branch
          %239 = sbr.rel (%p237) target = $region20
        $region19: #{_attn_gate_impl.1} parent=11 // pred_region
          %s241 = ssub.s32 512, 512
          %242 = vsyncadd [#allocation6], %s241
          %s243 = smul.addr %s28, 128
          %s244 = scalar_lea.hbm %s4, %s243
          %s245 = sshll.u32 [#allocation5], 4
          %s246 = int_to_ptr.vmem [resolvable:$true] %s245
          %251 = dma.hbm_to_vmem [thread:$0]  %s244, 512, %s246, [#allocation6], 128, 128, 8
        $region20: #{_attn_gate_impl.1} parent=11 // pred_fallthru
          _
        // Predicated region
        $region21: #{_attn_gate_impl.1} parent=11 // pred_check
          %p252 = pneg %p187
        $region22: #{_attn_gate_impl.1} parent=11 // pred_check_branch
          %254 = sbr.rel (%p252) target = $region24
        $region23: #{_attn_gate_impl.1} parent=11 // pred_region
          %p255 = scmp.lt.s32.totalorder %s28, 0
          %s256 = scalar_select %p255, %s28, 0
          %s257 = scalar_lea.vmem %s5, %s256
        $region24: #{_attn_gate_impl.1} parent=11 // pred_fallthru
          _
      $region12: #{_attn_gate_impl.1} parent=5 // pred_fallthru
        _
      %p258 = scmp.lt.s32.totalorder %s19, 2
      // Predicated region
      $region25: #{_attn_gate_impl.1} parent=5 // pred_check
        %p259 = pneg %p258
      $region26: #{_attn_gate_impl.1} parent=5 // pred_check_branch
        %261 = sbr.rel (%p259) target = $region28
      $region27: #{_attn_gate_impl.1} parent=5 // pred_region
        // Predicated region
        $region29: #{_attn_gate_impl.1} parent=27 // pred_check
          %p262 = pneg %p51
        $region30: #{_attn_gate_impl.1} parent=27 // pred_check_branch
          %264 = sbr.rel (%p262) target = $region32
        $region31: #{_attn_gate_impl.1} parent=27 // pred_region
          %p265 = scmp.lt.s32.totalorder %s27, 1
          %s266 = scalar_select %p265, %s27, 1
          %s267 = smul.addr %s266, 8
          %s268 = scalar_lea.vmem %s0, %s267
        $region32: #{_attn_gate_impl.1} parent=27 // pred_fallthru
          _
        // Predicated region
        $region33: #{_attn_gate_impl.1} parent=27 // pred_check
          %p269 = pneg %p77
        $region34: #{_attn_gate_impl.1} parent=27 // pred_check_branch
          %271 = sbr.rel (%p269) target = $region36
        $region35: #{_attn_gate_impl.1} parent=27 // pred_region
          %s272 = sand.u32 %s67, 1
          %s273 = scalar_lea.sflag [#allocation3], %s272
          %s274 = sand.u32 %s67, 1
          %s275 = smul.addr %s274, 8
          %s276 = scalar_lea.vmem [#allocation2], %s275
          %s278 = ssub.s32 128, 128
          %279 = vsyncadd %s273, %s278
          %s280 = smul.addr %s27, 128
          %s281 = scalar_lea.hbm %s1, %s280
          %s283 = sshll.u32 %s276, 4
          %s284 = int_to_ptr.vmem [resolvable:$true] %s283
          %286 = dma.hbm_to_vmem [thread:$0]  %s281, 128, %s284, %s273
        $region36: #{_attn_gate_impl.1} parent=27 // pred_fallthru
          _
        // Predicated region
        $region37: #{_attn_gate_impl.1} parent=27 // pred_check
          %p287 = pneg %p103
        $region38: #{_attn_gate_impl.1} parent=27 // pred_check_branch
          %289 = sbr.rel (%p287) target = $region40
        $region39: #{_attn_gate_impl.1} parent=27 // pred_region
          %p290 = scmp.lt.s32.totalorder %s27, 1
          %s291 = scalar_select %p290, %s27, 1
          %s292 = smul.addr %s291, 8
          %s293 = scalar_lea.vmem %s2, %s292
        $region40: #{_attn_gate_impl.1} parent=27 // pred_fallthru
          _
      $region28: #{_attn_gate_impl.1} parent=5 // pred_fallthru
        _
      %p294 = scmp.le.s32.totalorder 1, %s19
      %p295 = scmp.lt.s32.totalorder %s19, 3
      %p296 = pnand %p294, %p295
      %p297 = pneg %p296
      // Predicated region
      $region41: #{_attn_gate_impl.1} parent=5 // pred_check
        _
      $region42: #{_attn_gate_impl.1} parent=5 // pred_check_branch
        %299 = sbr.rel (%p296) target = $region44
      $region43: #{_attn_gate_impl.1} parent=5 // pred_region
        %s300 = ssub.s32 %s19, 1
        %s301 = sand.u32 %s70, 1
        %s302 = scalar_lea.sflag [#allocation3], %s301
        %s303 = sand.u32 %s70, 1
        %s304 = smul.addr %s303, 8
        %s305 = scalar_lea.vmem [#allocation2], %s304
        // Predicated region
        $region45: #{_attn_gate_impl.1} parent=43 // pred_check
          %p306 = pneg %p83
        $region46: #{_attn_gate_impl.1} parent=43 // pred_check_branch
          %308 = sbr.rel (%p306) target = $region48
        $region47: #{_attn_gate_impl.1} parent=43 // pred_region
          %309 = dma.done %s302, 128
        $region48: #{_attn_gate_impl.1} parent=43 // pred_fallthru
          _
        // Predicated region
        $region49: #{_attn_gate_impl.1} parent=43 // pred_check
          %p310 = pneg %p161
        $region50: #{_attn_gate_impl.1} parent=43 // pred_check_branch
          %312 = sbr.rel (%p310) target = $region52
        $region51: #{_attn_gate_impl.1} parent=43 // pred_region
          %313 = dma.done [#allocation6], 512
        $region52: #{_attn_gate_impl.1} parent=43 // pred_fallthru
          _
        %p314 = scmp.lt.s32.totalorder %s29, 1
        %s315 = scalar_select %p314, %s29, 1
        %s316 = smul.addr %s315, 8
        %s317 = scalar_lea.vmem %s0, %s316
        %p318 = pneg %p57
        %p319 = pneg %p54
        %s320 = sand.u32 %s70, 1
        %s321 = scalar_lea.sflag [#allocation3], %s320
        %s322 = sand.u32 %s70, 1
        %s323 = smul.addr %s322, 8
        %s324 = scalar_lea.vmem [#allocation2], %s323
        %p325 = pneg %p83
        %p326 = pneg %p80
        %p327 = scmp.lt.s32.totalorder %s29, 1
        %s328 = scalar_select %p327, %s29, 1
        %s329 = smul.addr %s328, 8
        %s330 = scalar_lea.vmem %s2, %s329
        %p331 = pneg %p109
        %p332 = pneg %p106
        %p333 = scmp.lt.s32.totalorder %s28, 0
        %s334 = scalar_select %p333, %s28, 0
        %s335 = smul.addr %s334, 8
        %s336 = scalar_lea.vmem %s3, %s335
        %p337 = pneg %p135
        %p338 = pneg %p132
        %p339 = pneg %p161
        %p340 = pneg %p158
        %p341 = scmp.lt.s32.totalorder %s28, 0
        %s342 = scalar_select %p341, %s28, 0
        %s343 = scalar_lea.vmem %s5, %s342
        %p344 = pneg %p187
        %p345 = pneg %p184
        %p346 = pneg %p215
        %p347 = pneg %p212
        %s348 = sand.u32 %s202, 1
        %s349 = scalar_lea.sflag [#allocation4], %s348
        %s350 = sand.u32 %s202, 1
        %s351 = smul.addr %s350, 8
        %s352 = scalar_lea.vmem [#allocation7], %s351
        %p353 = scmp.lt.s32.totalorder %s29, 1
        %s354 = scalar_select %p353, %s29, 1
        %s355 = smul.addr %s354, 8
        %s356 = scalar_lea.vmem %s0, %s355
        %p357 = scmp.lt.s32.totalorder %s29, 1
        %s358 = scalar_select %p357, %s29, 1
        %s359 = smul.addr %s358, 8
        %s360 = scalar_lea.vmem %s2, %s359
        %p361 = scmp.lt.s32.totalorder %s28, 0
        %s362 = scalar_select %p361, %s28, 0
        %s363 = smul.addr %s362, 8
        %s364 = scalar_lea.vmem %s3, %s363
        %p365 = scmp.lt.s32.totalorder %s28, 0
        %s366 = scalar_select %p365, %s28, 0
        %s367 = scalar_lea.vmem %s5, %s366
        %v368 = vld [vmem:[%s356] sm:$0xff]
        %v369 = vld [vmem:[%s305] sm:$0xff]
        %v370 = vld [vmem:[%s364] sm:$0xff]
        %v371 = vld [vmem:[%s364 + $0x8] sm:$0xff]
        %v372 = vld [vmem:[%s364 + $0x10] sm:$0xff]
        %v373 = vld [vmem:[%s364 + $0x18] sm:$0xff]
        %v374 = vld [vmem:[#allocation5] sm:$0xff]
        %v375 = vld [vmem:[#allocation5 + $0x8] sm:$0xff]
        %v376 = vld [vmem:[#allocation5 + $0x10] sm:$0xff]
        %v377 = vld [vmem:[#allocation5 + $0x18] sm:$0xff]
        %vm378 = vcmask 261120
        %v380 = vsel %vm378, %v369, 0
        %382 = vmatprep.subr.mxu0 0.0
        %383 = vmatpush1.msra.mxu0 %v374
        %384 = vmatprep.subr.mxu0 0.0
        %385 = vmatpush1.msra.mxu0 %v375
        %386 = vmatprep.subr.mxu0 0.0
        %387 = vmatpush1.msra.mxu0 %v376
        %388 = vmatprep.subr.mxu0 0.0
        %389 = vmatpush1.msra.mxu0 %v377
        %390 = vmatprep.subr.mxu0 0.0
        %391 = vmatpush1.msra.mxu0 0.0
        %392 = vmatprep.subr.mxu0 0.0
        %393 = vmatpush1.msra.mxu0 0.0
        %394 = vmatprep.subr.mxu0 0.0
        %395 = vmatpush1.msra.mxu0 0.0
        %396 = vmatprep.subr.mxu0 0.0
        %397 = vmatpush1.msra.mxu0 0.0
        %398 = vmatprep.subr.mxu0 0.0
        %399 = vmatpush1.msra.mxu0 0.0
        %400 = vmatprep.subr.mxu0 0.0
        %401 = vmatpush1.msra.mxu0 0.0
        %402 = vmatprep.subr.mxu0 0.0
        %403 = vmatpush1.msra.mxu0 0.0
        %404 = vmatprep.subr.mxu0 0.0
        %405 = vmatpush1.msra.mxu0 0.0
        %406 = vmatprep.subr.mxu0 0.0
        %407 = vmatpush1.msra.mxu0 0.0
        %408 = vmatprep.subr.mxu0 0.0
        %409 = vmatpush1.msra.mxu0 0.0
        %410 = vmatprep.subr.mxu0 0.0
        %411 = vmatpush1.msra.mxu0 0.0
        %412 = vmatprep.subr.mxu0 0.0
        %413 = vmatpush1.msra.mxu0 0.0
        %414 = vmatprep.subr.mxu0 0.0
        %415 = vmatpush1.msra.mxu0 0.0
        %416 = vmatprep.subr.mxu0 0.0
        %417 = vmatpush1.msra.mxu0 0.0
        %418 = vmatprep.subr.mxu0 0.0
        %419 = vmatpush1.msra.mxu0 0.0
        %420 = vmatprep.subr.mxu0 0.0
        %421 = vmatpush1.msra.mxu0 0.0
        %422 = vmatprep.subr.mxu0 0.0
        %423 = vmatpush1.msra.mxu0 0.0
        %424 = vmatprep.subr.mxu0 0.0
        %425 = vmatpush1.msra.mxu0 0.0
        %426 = vmatprep.subr.mxu0 0.0
        %427 = vmatpush1.msra.mxu0 0.0
        %428 = vmatprep.subr.mxu0 0.0
        %429 = vmatpush1.msra.mxu0 0.0
        %430 = vmatprep.subr.mxu0 0.0
        %431 = vmatpush1.msra.mxu0 0.0
        %432 = vmatprep.subr.mxu0 0.0
        %433 = vmatpush1.msra.mxu0 0.0
        %434 = vmatprep.subr.mxu0 0.0
        %435 = vmatpush1.msra.mxu0 0.0
        %436 = vmatprep.subr.mxu0 0.0
        %437 = vmatpush1.msra.mxu0 0.0
        %438 = vmatprep.subr.mxu0 0.0
        %439 = vmatpush1.msra.mxu0 0.0
        %440 = vmatprep.subr.mxu0 0.0
        %441 = vmatpush1.msra.mxu0 0.0
        %442 = vmatprep.subr.mxu0 0.0
        %443 = vmatpush1.msra.mxu0 0.0
        %444 = vmatprep.subr.mxu0 0.0
        %445 = vmatpush1.msra.mxu0 0.0
        %446 = vmatprep.mubr.f32.mxu0 0.0
        %447 = vmatmul.mubr.f32.gmra.mrb[0].mxu0 %v380
        %v448 = vpop.f32.mrb[0].mxu0
        %v449 = vadd.f32 0.0, %v448
        %v450 = vpop.f32.mrb[0].mxu0
        %451 = vdwg.mxu0
        %v453 = vsel %vm378, %v368, 0
        %455 = vmatprep.subr.mxu0 0.0
        %456 = vmatpush1.msra.mxu0 %v370
        %457 = vmatprep.subr.mxu0 0.0
        %458 = vmatpush1.msra.mxu0 %v371
        %459 = vmatprep.subr.mxu0 0.0
        %460 = vmatpush1.msra.mxu0 %v372
        %461 = vmatprep.subr.mxu0 0.0
        %462 = vmatpush1.msra.mxu0 %v373
        %463 = vmatprep.subr.mxu0 0.0
        %464 = vmatpush1.msra.mxu0 0.0
        %465 = vmatprep.subr.mxu0 0.0
        %466 = vmatpush1.msra.mxu0 0.0
        %467 = vmatprep.subr.mxu0 0.0
        %468 = vmatpush1.msra.mxu0 0.0
        %469 = vmatprep.subr.mxu0 0.0
        %470 = vmatpush1.msra.mxu0 0.0
        %471 = vmatprep.subr.mxu0 0.0
        %472 = vmatpush1.msra.mxu0 0.0
        %473 = vmatprep.subr.mxu0 0.0
        %474 = vmatpush1.msra.mxu0 0.0
        %475 = vmatprep.subr.mxu0 0.0
        %476 = vmatpush1.msra.mxu0 0.0
        %477 = vmatprep.subr.mxu0 0.0
        %478 = vmatpush1.msra.mxu0 0.0
        %479 = vmatprep.subr.mxu0 0.0
        %480 = vmatpush1.msra.mxu0 0.0
        %481 = vmatprep.subr.mxu0 0.0
        %482 = vmatpush1.msra.mxu0 0.0
        %483 = vmatprep.subr.mxu0 0.0
        %484 = vmatpush1.msra.mxu0 0.0
        %485 = vmatprep.subr.mxu0 0.0
        %486 = vmatpush1.msra.mxu0 0.0
        %487 = vmatprep.subr.mxu0 0.0
        %488 = vmatpush1.msra.mxu0 0.0
        %489 = vmatprep.subr.mxu0 0.0
        %490 = vmatpush1.msra.mxu0 0.0
        %491 = vmatprep.subr.mxu0 0.0
        %492 = vmatpush1.msra.mxu0 0.0
        %493 = vmatprep.subr.mxu0 0.0
        %494 = vmatpush1.msra.mxu0 0.0
        %495 = vmatprep.subr.mxu0 0.0
        %496 = vmatpush1.msra.mxu0 0.0
        %497 = vmatprep.subr.mxu0 0.0
        %498 = vmatpush1.msra.mxu0 0.0
        %499 = vmatprep.subr.mxu0 0.0
        %500 = vmatpush1.msra.mxu0 0.0
        %501 = vmatprep.subr.mxu0 0.0
        %502 = vmatpush1.msra.mxu0 0.0
        %503 = vmatprep.subr.mxu0 0.0
        %504 = vmatpush1.msra.mxu0 0.0
        %505 = vmatprep.subr.mxu0 0.0
        %506 = vmatpush1.msra.mxu0 0.0
        %507 = vmatprep.subr.mxu0 0.0
        %508 = vmatpush1.msra.mxu0 0.0
        %509 = vmatprep.subr.mxu0 0.0
        %510 = vmatpush1.msra.mxu0 0.0
        %511 = vmatprep.subr.mxu0 0.0
        %512 = vmatpush1.msra.mxu0 0.0
        %513 = vmatprep.subr.mxu0 0.0
        %514 = vmatpush1.msra.mxu0 0.0
        %515 = vmatprep.subr.mxu0 0.0
        %516 = vmatpush1.msra.mxu0 0.0
        %517 = vmatprep.subr.mxu0 0.0
        %518 = vmatpush1.msra.mxu0 0.0
        %519 = vmatprep.mubr.f32.mxu0 0.0
        %520 = vmatmul.mubr.f32.gmra.mrb[0].mxu0 %v453
        %v521 = vpop.f32.mrb[0].mxu0
        %v522 = vadd.f32 %v449, %v521
        %v523 = vpop.f32.mrb[0].mxu0
        %524 = vdwg.mxu0
        %v525 = vld [vmem:[%s367] sm:$0x1]
        %v527 = vlaneseq
        %v528 = vshrl.u32 %v527, 7
        %v529 = vsub.s32 0, %v528
        %v530 = vrot.slane %v525, %v529
        %v532 = vadd.f32 %v522, %v530
        %v533 = vld [vmem:[%s360] sm:$0xff]
        %v534 = vmul.f32 %v533, 1e+09
        %536 = vset.pattern.permute.xlu0 0
        %537 = vperm.xlu0 %536, %v534
        %v538 = vpop.permute.xlu0 %537
        %v540 = vadd.f32 %v532, %v538
        %v541 = vsub.f32 0.0, %v540
        %v542 = vmul.f32 %v541, 1.442695
        %v543 = vpow.pop %v542
        %v544 = vadd.f32 %v543, 1.0
        %v545 = vrcp.pop %v544
        %v546 = vsub.f32 %v368, %v369
        %v547 = vmul.f32 %v545, %v546
        %v548 = vadd.f32 %v369, %v547
        %549 = vst.msk [vmem:[%s352] sm:$0xff] %vm378, %v548
        %s550 = sand.u32 %s202, 1
        %s551 = scalar_lea.sflag [#allocation4], %s550
        %s552 = sand.u32 %s202, 1
        %s553 = smul.addr %s552, 8
        %s554 = scalar_lea.vmem [#allocation7], %s553
        // Predicated region
        $region53: #{_attn_gate_impl.1} parent=43 // pred_check
          %p555 = pneg %p212
        $region54: #{_attn_gate_impl.1} parent=43 // pred_check_branch
          %557 = sbr.rel (%p555) target = $region56
        $region55: #{_attn_gate_impl.1} parent=43 // pred_region
          %s559 = ssub.s32 128, 128
          %560 = vsyncadd %s551, %s559
          %s561 = sadd.s32 %s28, %s29
          %s562 = smul.addr %s561, 128
          %s563 = scalar_lea.hbm %s6, %s562
          %s565 = sshll.u32 %s554, 4
          %s566 = int_to_ptr.vmem [resolvable:$true] %s565
          %568 = dma.vmem_to_hbm [thread:$0]  %s566, 128, %s563, %s551
        $region56: #{_attn_gate_impl.1} parent=43 // pred_fallthru
          _
      $region44: #{_attn_gate_impl.1} parent=5 // pred_fallthru
        _
      %p569 = scmp.le.s32.totalorder 2, %s19
      // Predicated region
      $region57: #{_attn_gate_impl.1} parent=5 // pred_check
        %p570 = pneg %p569
      $region58: #{_attn_gate_impl.1} parent=5 // pred_check_branch
        %572 = sbr.rel (%p570) target = $region60
      $region59: #{_attn_gate_impl.1} parent=5 // pred_region
        %s573 = ssub.s32 %s19, 2
        // Predicated region
        $region61: #{_attn_gate_impl.1} parent=59 // pred_check
          %p574 = pneg %p218
        $region62: #{_attn_gate_impl.1} parent=59 // pred_check_branch
          %576 = sbr.rel (%p574) target = $region64
        $region63: #{_attn_gate_impl.1} parent=59 // pred_region
          %s577 = sand.u32 %s203, 1
          %s578 = scalar_lea.sflag [#allocation4], %s577
          %s579 = sand.u32 %s203, 1
          %s580 = smul.addr %s579, 8
          %s581 = scalar_lea.vmem [#allocation7], %s580
          %582 = dma.done %s578, 128
        $region64: #{_attn_gate_impl.1} parent=59 // pred_fallthru
          _
      $region60: #{_attn_gate_impl.1} parent=5 // pred_fallthru
        _
    $region6: #{_attn_gate_impl.1} parent=1 // loop_footer
      %s23 = sadd.s32 1, %s19
    $region7: #{_attn_gate_impl.1} parent=1 // loop_footer_branch
      %18 = sbr.rel target = $region3
    $region8: #{_attn_gate_impl.1} parent=1 // loop_exit
      _
    %583 = vsyncpa [#allocation3], 1
    %s584 = scalar_lea.sflag [#allocation3], 1
    %585 = vsyncpa %s584, 1
    %586 = vsyncpa [#allocation6], 1
    %587 = vsyncpa [#allocation4], 1
    %s588 = scalar_lea.sflag [#allocation4], 1
    %589 = vsyncpa %s588, 1

// kernel: _attn_gate_impl.1
$region0: #{_attn_gate_impl.1}
  #allocation0 [shape = 'u32[]', space=smem, size = 0x4, offset = 0x4, fixed_abs, tag = 'smem constant byte address 0x4 - core index']
  #allocation1 [shape = 'u32[144,128]{1,0:T(1,128)}', space=vmem, size = 0x12000, scoped, tag = 'internal scratch']
  %s0 = inlined_call_operand.vmem [shape: f32[16,32], index: 0, kind: input, shape index: {}]
  %s1 = inlined_call_operand.hbm [shape: f32[16,32], index: 1, kind: input, shape index: {}]
  %s2 = inlined_call_operand.vmem [shape: f32[16,1], index: 2, kind: input, shape index: {}]
  %s3 = inlined_call_operand.vmem [shape: f32[32,32], index: 3, kind: input, shape index: {}]
  %s4 = inlined_call_operand.hbm [shape: f32[32,32], index: 4, kind: input, shape index: {}]
  %s5 = inlined_call_operand.vmem [shape: f32[1,32], index: 5, kind: input, shape index: {}]
  %s6 = inlined_call_operand.hbm [shape: f32[16,32], index: 6, kind: output, shape index: {}]
  %s7 = sld [smem:[#allocation0]]
  $region65: #{_attn_gate_impl.1} parent=0
    _
  %s9 = ssub.s32 1, %s7
  %s10 = scalar_select 0, %s9, %s7
  $region1: #{_attn_gate_impl.1} parent=0
    #allocation2 [shape = 'u8[8192]{0}', space=vmem, size = 0x2000, scoped, tag = 'input window, operand 1']
    #allocation3 [shape = 's32[2]{0}', space=sflag, size = 0x8, scoped, tag = 'scoped memory for _attn_gate_impl.1']
    #allocation4 [shape = 's32[2]{0}', space=sflag, size = 0x8, scoped, tag = 'scoped memory for _attn_gate_impl.1']
    #allocation5 [shape = 'u8[16384]{0}', space=vmem, size = 0x4000, scoped, tag = 'input window, operand 4, single buffered']
    #allocation6 [shape = 's32[1]{0}', space=sflag, size = 0x4, scoped, tag = 'scoped memory for _attn_gate_impl.1']
    #allocation7 [shape = 'u8[8192]{0}', space=vmem, size = 0x2000, scoped, tag = 'output window, operand 0']
    %11 = vsyncpa [#allocation3], 0
    %s12 = scalar_lea.sflag [#allocation3], 1
    %13 = vsyncpa %s12, 0
    %14 = vsyncpa [#allocation6], 0
    %15 = vsyncpa [#allocation4], 0
    %s16 = scalar_lea.sflag [#allocation4], 1
    %17 = vsyncpa %s16, 0
    loop: start=0, step=1, limit=4
    $region2: #{_attn_gate_impl.1} parent=1 // loop_pre_header
      _
    $region3: #{_attn_gate_impl.1} parent=1 // loop_header
      %s19 = sphi 0, %s23
      %p20 = scmp.ge.s32.totalorder %s19, 4
      %s26 = sphi 0, %s38
      %s27 = sphi 0, %s34
      %s28 = sphi 0, %s26
      %s29 = sphi 0, %s27
      %s30 = sphi 0, %s28
      %s31 = sphi 0, %s29
      %s41 = sphi 0, %s43
      %s44 = sphi 0, %s41
      %s45 = sphi 0, %s44
      %s61 = sphi 0, %s45
      %s67 = sphi 0, %s69
      %s70 = sphi 0, %s67
      %s71 = sphi 0, %s70
      %s87 = sphi 0, %s71
      %s93 = sphi 0, %s95
      %s96 = sphi 0, %s93
      %s97 = sphi 0, %s96
      %s113 = sphi 0, %s97
      %s119 = sphi 0, %s121
      %s122 = sphi 0, %s119
      %s123 = sphi 0, %s122
      %s139 = sphi 0, %s123
      %s145 = sphi 0, %s147
      %s148 = sphi 0, %s145
      %s149 = sphi 0, %s148
      %s165 = sphi 0, %s149
      %s171 = sphi 0, %s173
      %s174 = sphi 0, %s171
      %s175 = sphi 0, %s174
      %s191 = sphi 0, %s175
      %s199 = sphi 0, %s201
      %s202 = sphi 0, %s199
      %s203 = sphi 0, %s202
      %s219 = sphi 0, %s203
    $region4: #{_attn_gate_impl.1} parent=1 // loop_header_branch
      %22 = sbr.rel (%p20) target = $region8
    $region5: #{_attn_gate_impl.1} parent=1 // loop_body
      %s24 = ssub.s32 %s19, 1
      %s25 = ssub.s32 %s19, 2
      %s32 = sadd.s32 1, %s27
      %p33 = scmp.ge.s32.totalorder %s32, 2
      %s34 = scalar_select %p33, 0, %s32
      %s35 = sadd.s32 1, %s26
      %s36 = scalar_select %p33, %s35, %s26
      %p37 = scmp.ge.s32.totalorder %s36, 1
      %s38 = scalar_select %p37, 0, %s36
      %s39 = ssub.s32 %s27, %s34
      %p40 = scmp.eq.s32.totalorder %s39, 0
      %s42 = sadd.s32 %s41, 1
      %s43 = scalar_select %p40, %s41, %s42
      %p46 = pneg %p40
      %p47 = scmp.eq.s32.totalorder %s19, 1
      %p48 = por %p46, %p47
      %p49 = scmp.ne.s32.totalorder %s41, %s44
      %p50 = scmp.eq.s32.totalorder %s19, 0
      %p51 = por %p49, %p50
      %p52 = scmp.ne.s32.totalorder %s41, %s44
      %p53 = scmp.eq.s32.totalorder %s24, 1
      %p54 = por %p52, %p53
      %p55 = scmp.ne.s32.totalorder %s44, %s45
      %p56 = scmp.eq.s32.totalorder %s24, 0
      %p57 = por %p55, %p56
      %p58 = scmp.ne.s32.totalorder %s44, %s45
      %p59 = scmp.eq.s32.totalorder %s25, 1
      %p60 = por %p58, %p59
      %p62 = scmp.ne.s32.totalorder %s45, %s61
      %p63 = scmp.eq.s32.totalorder %s25, 0
      %p64 = por %p62, %p63
      %s65 = ssub.s32 %s27, %s34
      %p66 = scmp.eq.s32.totalorder %s65, 0
      %s68 = sadd.s32 %s67, 1
      %s69 = scalar_select %p66, %s67, %s68
      %p72 = pneg %p66
      %p73 = scmp.eq.s32.totalorder %s19, 1
      %p74 = por %p72, %p73
      %p75 = scmp.ne.s32.totalorder %s67, %s70
      %p76 = scmp.eq.s32.totalorder %s19, 0
      %p77 = por %p75, %p76
      %p78 = scmp.ne.s32.totalorder %s67, %s70
      %p79 = scmp.eq.s32.totalorder %s24, 1
      %p80 = por %p78, %p79
      %p81 = scmp.ne.s32.totalorder %s70, %s71
      %p82 = scmp.eq.s32.totalorder %s24, 0
      %p83 = por %p81, %p82
      %p84 = scmp.ne.s32.totalorder %s70, %s71
      %p85 = scmp.eq.s32.totalorder %s25, 1
      %p86 = por %p84, %p85
      %p88 = scmp.ne.s32.totalorder %s71, %s87
      %p89 = scmp.eq.s32.totalorder %s25, 0
      %p90 = por %p88, %p89
      %s91 = ssub.s32 %s27, %s34
      %p92 = scmp.eq.s32.totalorder %s91, 0
      %s94 = sadd.s32 %s93, 1
      %s95 = scalar_select %p92, %s93, %s94
      %p98 = pneg %p92
      %p99 = scmp.eq.s32.totalorder %s19, 1
      %p100 = por %p98, %p99
      %p101 = scmp.ne.s32.totalorder %s93, %s96
      %p102 = scmp.eq.s32.totalorder %s19, 0
      %p103 = por %p101, %p102
      %p104 = scmp.ne.s32.totalorder %s93, %s96
      %p105 = scmp.eq.s32.totalorder %s24, 1
      %p106 = por %p104, %p105
      %p107 = scmp.ne.s32.totalorder %s96, %s97
      %p108 = scmp.eq.s32.totalorder %s24, 0
      %p109 = por %p107, %p108
      %p110 = scmp.ne.s32.totalorder %s96, %s97
      %p111 = scmp.eq.s32.totalorder %s25, 1
      %p112 = por %p110, %p111
      %p114 = scmp.ne.s32.totalorder %s97, %s113
      %p115 = scmp.eq.s32.totalorder %s25, 0
      %p116 = por %p114, %p115
      %s117 = ssub.s32 %s26, %s38
      %p118 = scmp.eq.s32.totalorder %s117, 0
      %s120 = sadd.s32 %s119, 1
      %s121 = scalar_select %p118, %s119, %s120
      %p124 = pneg %p118
      %p125 = scmp.eq.s32.totalorder %s19, 1
      %p126 = por %p124, %p125
      %p127 = scmp.ne.s32.totalorder %s119, %s122
      %p128 = scmp.eq.s32.totalorder %s19, 0
      %p129 = por %p127, %p128
      %p130 = scmp.ne.s32.totalorder %s119, %s122
      %p131 = scmp.eq.s32.totalorder %s24, 1
      %p132 = por %p130, %p131
      %p133 = scmp.ne.s32.totalorder %s122, %s123
      %p134 = scmp.eq.s32.totalorder %s24, 0
      %p135 = por %p133, %p134
      %p136 = scmp.ne.s32.totalorder %s122, %s123
      %p137 = scmp.eq.s32.totalorder %s25, 1
      %p138 = por %p136, %p137
      %p140 = scmp.ne.s32.totalorder %s123, %s139
      %p141 = scmp.eq.s32.totalorder %s25, 0
      %p142 = por %p140, %p141
      %s143 = ssub.s32 %s26, %s38
      %p144 = scmp.eq.s32.totalorder %s143, 0
      %s146 = sadd.s32 %s145, 1
      %s147 = scalar_select %p144, %s145, %s146
      %p150 = pneg %p144
      %p151 = scmp.eq.s32.totalorder %s19, 1
      %p152 = por %p150, %p151
      %p153 = scmp.ne.s32.totalorder %s145, %s148
      %p154 = scmp.eq.s32.totalorder %s19, 0
      %p155 = por %p153, %p154
      %p156 = scmp.ne.s32.totalorder %s145, %s148
      %p157 = scmp.eq.s32.totalorder %s24, 1
      %p158 = por %p156, %p157
      %p159 = scmp.ne.s32.totalorder %s148, %s149
      %p160 = scmp.eq.s32.totalorder %s24, 0
      %p161 = por %p159, %p160
      %p162 = scmp.ne.s32.totalorder %s148, %s149
      %p163 = scmp.eq.s32.totalorder %s25, 1
      %p164 = por %p162, %p163
      %p166 = scmp.ne.s32.totalorder %s149, %s165
      %p167 = scmp.eq.s32.totalorder %s25, 0
      %p168 = por %p166, %p167
      %s169 = ssub.s32 %s26, %s38
      %p170 = scmp.eq.s32.totalorder %s169, 0
      %s172 = sadd.s32 %s171, 1
      %s173 = scalar_select %p170, %s171, %s172
      %p176 = pneg %p170
      %p177 = scmp.eq.s32.totalorder %s19, 1
      %p178 = por %p176, %p177
      %p179 = scmp.ne.s32.totalorder %s171, %s174
      %p180 = scmp.eq.s32.totalorder %s19, 0
      %p181 = por %p179, %p180
      %p182 = scmp.ne.s32.totalorder %s171, %s174
      %p183 = scmp.eq.s32.totalorder %s24, 1
      %p184 = por %p182, %p183
      %p185 = scmp.ne.s32.totalorder %s174, %s175
      %p186 = scmp.eq.s32.totalorder %s24, 0
      %p187 = por %p185, %p186
      %p188 = scmp.ne.s32.totalorder %s174, %s175
      %p189 = scmp.eq.s32.totalorder %s25, 1
      %p190 = por %p188, %p189
      %p192 = scmp.ne.s32.totalorder %s175, %s191
      %p193 = scmp.eq.s32.totalorder %s25, 0
      %p194 = por %p192, %p193
      %s195 = ssub.s32 %s27, %s34
      %s196 = ssub.s32 %s26, %s38
      %s197 = sor.u32 %s195, %s196
      %p198 = scmp.eq.s32.totalorder %s197, 0
      %s200 = sadd.s32 %s199, 1
      %s201 = scalar_select %p198, %s199, %s200
      %p204 = pneg %p198
      %p205 = scmp.eq.s32.totalorder %s19, 1
      %p206 = por %p204, %p205
      %p207 = scmp.ne.s32.totalorder %s199, %s202
      %p208 = scmp.eq.s32.totalorder %s19, 0
      %p209 = por %p207, %p208
      %p210 = scmp.ne.s32.totalorder %s199, %s202
      %p211 = scmp.eq.s32.totalorder %s24, 1
      %p212 = por %p210, %p211
      %p213 = scmp.ne.s32.totalorder %s202, %s203
      %p214 = scmp.eq.s32.totalorder %s24, 0
      %p215 = por %p213, %p214
      %p216 = scmp.ne.s32.totalorder %s202, %s203
      %p217 = scmp.eq.s32.totalorder %s25, 1
      %p218 = por %p216, %p217
      %p220 = scmp.ne.s32.totalorder %s203, %s219
      %p221 = scmp.eq.s32.totalorder %s25, 0
      %p222 = por %p220, %p221
      %p223 = scmp.le.s32.totalorder 1, %s19
      %p224 = scmp.lt.s32.totalorder %s19, 3
      %p225 = pnand %p223, %p224
      %p226 = pneg %p225
      // Predicated region
      $region9: #{_attn_gate_impl.1} parent=5 // pred_check
        _
      $region10: #{_attn_gate_impl.1} parent=5 // pred_check_branch
        %228 = sbr.rel (%p225) target = $region12
      $region11: #{_attn_gate_impl.1} parent=5 // pred_region
        %s229 = ssub.s32 %s19, 1
        // Predicated region
        $region13: #{_attn_gate_impl.1} parent=11 // pred_check
          %p230 = pneg %p135
        $region14: #{_attn_gate_impl.1} parent=11 // pred_check_branch
          %232 = sbr.rel (%p230) target = $region16
        $region15: #{_attn_gate_impl.1} parent=11 // pred_region
          %p233 = scmp.lt.s32.totalorder %s28, 0
          %s234 = scalar_select %p233, %s28, 0
          %s235 = smul.addr %s234, 8
          %s236 = scalar_lea.vmem %s3, %s235
        $region16: #{_attn_gate_impl.1} parent=11 // pred_fallthru
          _
        // Predicated region
        $region17: #{_attn_gate_impl.1} parent=11 // pred_check
          %p237 = pneg %p161
        $region18: #{_attn_gate_impl.1} parent=11 // pred_check_branch
          %239 = sbr.rel (%p237) target = $region20
        $region19: #{_attn_gate_impl.1} parent=11 // pred_region
          %s241 = ssub.s32 512, 512
          %242 = vsyncadd [#allocation6], %s241
          %s243 = smul.addr %s28, 128
          %s244 = scalar_lea.hbm %s4, %s243
          %s245 = sshll.u32 [#allocation5], 4
          %s246 = int_to_ptr.vmem [resolvable:$true] %s245
          %251 = dma.hbm_to_vmem [thread:$0]  %s244, 512, %s246, [#allocation6], 128, 128, 8
        $region20: #{_attn_gate_impl.1} parent=11 // pred_fallthru
          _
        // Predicated region
        $region21: #{_attn_gate_impl.1} parent=11 // pred_check
          %p252 = pneg %p187
        $region22: #{_attn_gate_impl.1} parent=11 // pred_check_branch
          %254 = sbr.rel (%p252) target = $region24
        $region23: #{_attn_gate_impl.1} parent=11 // pred_region
          %p255 = scmp.lt.s32.totalorder %s28, 0
          %s256 = scalar_select %p255, %s28, 0
          %s257 = scalar_lea.vmem %s5, %s256
        $region24: #{_attn_gate_impl.1} parent=11 // pred_fallthru
          _
      $region12: #{_attn_gate_impl.1} parent=5 // pred_fallthru
        _
      %p258 = scmp.lt.s32.totalorder %s19, 2
      // Predicated region
      $region25: #{_attn_gate_impl.1} parent=5 // pred_check
        %p259 = pneg %p258
      $region26: #{_attn_gate_impl.1} parent=5 // pred_check_branch
        %261 = sbr.rel (%p259) target = $region28
      $region27: #{_attn_gate_impl.1} parent=5 // pred_region
        // Predicated region
        $region29: #{_attn_gate_impl.1} parent=27 // pred_check
          %p262 = pneg %p51
        $region30: #{_attn_gate_impl.1} parent=27 // pred_check_branch
          %264 = sbr.rel (%p262) target = $region32
        $region31: #{_attn_gate_impl.1} parent=27 // pred_region
          %p265 = scmp.lt.s32.totalorder %s27, 1
          %s266 = scalar_select %p265, %s27, 1
          %s267 = smul.addr %s266, 8
          %s268 = scalar_lea.vmem %s0, %s267
        $region32: #{_attn_gate_impl.1} parent=27 // pred_fallthru
          _
        // Predicated region
        $region33: #{_attn_gate_impl.1} parent=27 // pred_check
          %p269 = pneg %p77
        $region34: #{_attn_gate_impl.1} parent=27 // pred_check_branch
          %271 = sbr.rel (%p269) target = $region36
        $region35: #{_attn_gate_impl.1} parent=27 // pred_region
          %s272 = sand.u32 %s67, 1
          %s273 = scalar_lea.sflag [#allocation3], %s272
          %s274 = sand.u32 %s67, 1
          %s275 = smul.addr %s274, 8
          %s276 = scalar_lea.vmem [#allocation2], %s275
          %s278 = ssub.s32 128, 128
          %279 = vsyncadd %s273, %s278
          %s280 = smul.addr %s27, 128
          %s281 = scalar_lea.hbm %s1, %s280
          %s283 = sshll.u32 %s276, 4
          %s284 = int_to_ptr.vmem [resolvable:$true] %s283
          %286 = dma.hbm_to_vmem [thread:$0]  %s281, 128, %s284, %s273
        $region36: #{_attn_gate_impl.1} parent=27 // pred_fallthru
          _
        // Predicated region
        $region37: #{_attn_gate_impl.1} parent=27 // pred_check
          %p287 = pneg %p103
        $region38: #{_attn_gate_impl.1} parent=27 // pred_check_branch
          %289 = sbr.rel (%p287) target = $region40
        $region39: #{_attn_gate_impl.1} parent=27 // pred_region
          %p290 = scmp.lt.s32.totalorder %s27, 1
          %s291 = scalar_select %p290, %s27, 1
          %s292 = smul.addr %s291, 8
          %s293 = scalar_lea.vmem %s2, %s292
        $region40: #{_attn_gate_impl.1} parent=27 // pred_fallthru
          _
      $region28: #{_attn_gate_impl.1} parent=5 // pred_fallthru
        _
      %p294 = scmp.le.s32.totalorder 1, %s19
      %p295 = scmp.lt.s32.totalorder %s19, 3
      %p296 = pnand %p294, %p295
      %p297 = pneg %p296
      // Predicated region
      $region41: #{_attn_gate_impl.1} parent=5 // pred_check
        _
      $region42: #{_attn_gate_impl.1} parent=5 // pred_check_branch
        %299 = sbr.rel (%p296) target = $region44
      $region43: #{_attn_gate_impl.1} parent=5 // pred_region
        %s300 = ssub.s32 %s19, 1
        %s301 = sand.u32 %s70, 1
        %s302 = scalar_lea.sflag [#allocation3], %s301
        %s303 = sand.u32 %s70, 1
        %s304 = smul.addr %s303, 8
        %s305 = scalar_lea.vmem [#allocation2], %s304
        // Predicated region
        $region45: #{_attn_gate_impl.1} parent=43 // pred_check
          %p306 = pneg %p83
        $region46: #{_attn_gate_impl.1} parent=43 // pred_check_branch
          %308 = sbr.rel (%p306) target = $region48
        $region47: #{_attn_gate_impl.1} parent=43 // pred_region
          %309 = dma.done %s302, 128
        $region48: #{_attn_gate_impl.1} parent=43 // pred_fallthru
          _
        // Predicated region
        $region49: #{_attn_gate_impl.1} parent=43 // pred_check
          %p310 = pneg %p161
        $region50: #{_attn_gate_impl.1} parent=43 // pred_check_branch
          %312 = sbr.rel (%p310) target = $region52
        $region51: #{_attn_gate_impl.1} parent=43 // pred_region
          %313 = dma.done [#allocation6], 512
        $region52: #{_attn_gate_impl.1} parent=43 // pred_fallthru
          _
        %p314 = scmp.lt.s32.totalorder %s29, 1
        %s315 = scalar_select %p314, %s29, 1
        %s316 = smul.addr %s315, 8
        %s317 = scalar_lea.vmem %s0, %s316
        %p318 = pneg %p57
        %p319 = pneg %p54
        %s320 = sand.u32 %s70, 1
        %s321 = scalar_lea.sflag [#allocation3], %s320
        %s322 = sand.u32 %s70, 1
        %s323 = smul.addr %s322, 8
        %s324 = scalar_lea.vmem [#allocation2], %s323
        %p325 = pneg %p83
        %p326 = pneg %p80
        %p327 = scmp.lt.s32.totalorder %s29, 1
        %s328 = scalar_select %p327, %s29, 1
        %s329 = smul.addr %s328, 8
        %s330 = scalar_lea.vmem %s2, %s329
        %p331 = pneg %p109
        %p332 = pneg %p106
        %p333 = scmp.lt.s32.totalorder %s28, 0
        %s334 = scalar_select %p333, %s28, 0
        %s335 = smul.addr %s334, 8
        %s336 = scalar_lea.vmem %s3, %s335
        %p337 = pneg %p135
        %p338 = pneg %p132
        %p339 = pneg %p161
        %p340 = pneg %p158
        %p341 = scmp.lt.s32.totalorder %s28, 0
        %s342 = scalar_select %p341, %s28, 0
        %s343 = scalar_lea.vmem %s5, %s342
        %p344 = pneg %p187
        %p345 = pneg %p184
        %p346 = pneg %p215
        %p347 = pneg %p212
        %s348 = sand.u32 %s202, 1
        %s349 = scalar_lea.sflag [#allocation4], %s348
        %s350 = sand.u32 %s202, 1
        %s351 = smul.addr %s350, 8
        %s352 = scalar_lea.vmem [#allocation7], %s351
        %p353 = scmp.lt.s32.totalorder %s29, 1
        %s354 = scalar_select %p353, %s29, 1
        %s355 = smul.addr %s354, 8
        %s356 = scalar_lea.vmem %s0, %s355
        %p357 = scmp.lt.s32.totalorder %s29, 1
        %s358 = scalar_select %p357, %s29, 1
        %s359 = smul.addr %s358, 8
        %s360 = scalar_lea.vmem %s2, %s359
        %p361 = scmp.lt.s32.totalorder %s28, 0
        %s362 = scalar_select %p361, %s28, 0
        %s363 = smul.addr %s362, 8
        %s364 = scalar_lea.vmem %s3, %s363
        %p365 = scmp.lt.s32.totalorder %s28, 0
        %s366 = scalar_select %p365, %s28, 0
        %s367 = scalar_lea.vmem %s5, %s366
        %v368 = vld [vmem:[%s356] sm:$0xff]
        %v369 = vld [vmem:[%s305] sm:$0xff]
        %v370 = vld [vmem:[%s364] sm:$0xff]
        %v371 = vld [vmem:[%s364 + $0x8] sm:$0xff]
        %v372 = vld [vmem:[%s364 + $0x10] sm:$0xff]
        %v373 = vld [vmem:[%s364 + $0x18] sm:$0xff]
        %v374 = vld [vmem:[#allocation5] sm:$0xff]
        %v375 = vld [vmem:[#allocation5 + $0x8] sm:$0xff]
        %v376 = vld [vmem:[#allocation5 + $0x10] sm:$0xff]
        %v377 = vld [vmem:[#allocation5 + $0x18] sm:$0xff]
        %vm378 = vcmask 261120
        %v380 = vsel %vm378, %v369, 0
        %382 = vmatprep.subr.mxu0 0.0
        %383 = vmatpush1.msra.mxu0 %v374
        %384 = vmatprep.subr.mxu0 0.0
        %385 = vmatpush1.msra.mxu0 %v375
        %386 = vmatprep.subr.mxu0 0.0
        %387 = vmatpush1.msra.mxu0 %v376
        %388 = vmatprep.subr.mxu0 0.0
        %389 = vmatpush1.msra.mxu0 %v377
        %390 = vmatprep.subr.mxu0 0.0
        %391 = vmatpush1.msra.mxu0 0.0
        %392 = vmatprep.subr.mxu0 0.0
        %393 = vmatpush1.msra.mxu0 0.0
        %394 = vmatprep.subr.mxu0 0.0
        %395 = vmatpush1.msra.mxu0 0.0
        %396 = vmatprep.subr.mxu0 0.0
        %397 = vmatpush1.msra.mxu0 0.0
        %398 = vmatprep.subr.mxu0 0.0
        %399 = vmatpush1.msra.mxu0 0.0
        %400 = vmatprep.subr.mxu0 0.0
        %401 = vmatpush1.msra.mxu0 0.0
        %402 = vmatprep.subr.mxu0 0.0
        %403 = vmatpush1.msra.mxu0 0.0
        %404 = vmatprep.subr.mxu0 0.0
        %405 = vmatpush1.msra.mxu0 0.0
        %406 = vmatprep.subr.mxu0 0.0
        %407 = vmatpush1.msra.mxu0 0.0
        %408 = vmatprep.subr.mxu0 0.0
        %409 = vmatpush1.msra.mxu0 0.0
        %410 = vmatprep.subr.mxu0 0.0
        %411 = vmatpush1.msra.mxu0 0.0
        %412 = vmatprep.subr.mxu0 0.0
        %413 = vmatpush1.msra.mxu0 0.0
        %414 = vmatprep.subr.mxu0 0.0
        %415 = vmatpush1.msra.mxu0 0.0
        %416 = vmatprep.subr.mxu0 0.0
        %417 = vmatpush1.msra.mxu0 0.0
        %418 = vmatprep.subr.mxu0 0.0
        %419 = vmatpush1.msra.mxu0 0.0
        %420 = vmatprep.subr.mxu0 0.0
        %421 = vmatpush1.msra.mxu0 0.0
        %422 = vmatprep.subr.mxu0 0.0
        %423 = vmatpush1.msra.mxu0 0.0
        %424 = vmatprep.subr.mxu0 0.0
        %425 = vmatpush1.msra.mxu0 0.0
        %426 = vmatprep.subr.mxu0 0.0
        %427 = vmatpush1.msra.mxu0 0.0
        %428 = vmatprep.subr.mxu0 0.0
        %429 = vmatpush1.msra.mxu0 0.0
        %430 = vmatprep.subr.mxu0 0.0
        %431 = vmatpush1.msra.mxu0 0.0
        %432 = vmatprep.subr.mxu0 0.0
        %433 = vmatpush1.msra.mxu0 0.0
        %434 = vmatprep.subr.mxu0 0.0
        %435 = vmatpush1.msra.mxu0 0.0
        %436 = vmatprep.subr.mxu0 0.0
        %437 = vmatpush1.msra.mxu0 0.0
        %438 = vmatprep.subr.mxu0 0.0
        %439 = vmatpush1.msra.mxu0 0.0
        %440 = vmatprep.subr.mxu0 0.0
        %441 = vmatpush1.msra.mxu0 0.0
        %442 = vmatprep.subr.mxu0 0.0
        %443 = vmatpush1.msra.mxu0 0.0
        %444 = vmatprep.subr.mxu0 0.0
        %445 = vmatpush1.msra.mxu0 0.0
        %446 = vmatprep.mubr.f32.mxu0 0.0
        %447 = vmatmul.mubr.f32.gmra.mrb[0].mxu0 %v380
        %v448 = vpop.f32.mrb[0].mxu0
        %v449 = vadd.f32 0.0, %v448
        %v450 = vpop.f32.mrb[0].mxu0
        %451 = vdwg.mxu0
        %v453 = vsel %vm378, %v368, 0
        %455 = vmatprep.subr.mxu0 0.0
        %456 = vmatpush1.msra.mxu0 %v370
        %457 = vmatprep.subr.mxu0 0.0
        %458 = vmatpush1.msra.mxu0 %v371
        %459 = vmatprep.subr.mxu0 0.0
        %460 = vmatpush1.msra.mxu0 %v372
        %461 = vmatprep.subr.mxu0 0.0
        %462 = vmatpush1.msra.mxu0 %v373
        %463 = vmatprep.subr.mxu0 0.0
        %464 = vmatpush1.msra.mxu0 0.0
        %465 = vmatprep.subr.mxu0 0.0
        %466 = vmatpush1.msra.mxu0 0.0
        %467 = vmatprep.subr.mxu0 0.0
        %468 = vmatpush1.msra.mxu0 0.0
        %469 = vmatprep.subr.mxu0 0.0
        %470 = vmatpush1.msra.mxu0 0.0
        %471 = vmatprep.subr.mxu0 0.0
        %472 = vmatpush1.msra.mxu0 0.0
        %473 = vmatprep.subr.mxu0 0.0
        %474 = vmatpush1.msra.mxu0 0.0
        %475 = vmatprep.subr.mxu0 0.0
        %476 = vmatpush1.msra.mxu0 0.0
        %477 = vmatprep.subr.mxu0 0.0
        %478 = vmatpush1.msra.mxu0 0.0
        %479 = vmatprep.subr.mxu0 0.0
        %480 = vmatpush1.msra.mxu0 0.0
        %481 = vmatprep.subr.mxu0 0.0
        %482 = vmatpush1.msra.mxu0 0.0
        %483 = vmatprep.subr.mxu0 0.0
        %484 = vmatpush1.msra.mxu0 0.0
        %485 = vmatprep.subr.mxu0 0.0
        %486 = vmatpush1.msra.mxu0 0.0
        %487 = vmatprep.subr.mxu0 0.0
        %488 = vmatpush1.msra.mxu0 0.0
        %489 = vmatprep.subr.mxu0 0.0
        %490 = vmatpush1.msra.mxu0 0.0
        %491 = vmatprep.subr.mxu0 0.0
        %492 = vmatpush1.msra.mxu0 0.0
        %493 = vmatprep.subr.mxu0 0.0
        %494 = vmatpush1.msra.mxu0 0.0
        %495 = vmatprep.subr.mxu0 0.0
        %496 = vmatpush1.msra.mxu0 0.0
        %497 = vmatprep.subr.mxu0 0.0
        %498 = vmatpush1.msra.mxu0 0.0
        %499 = vmatprep.subr.mxu0 0.0
        %500 = vmatpush1.msra.mxu0 0.0
        %501 = vmatprep.subr.mxu0 0.0
        %502 = vmatpush1.msra.mxu0 0.0
        %503 = vmatprep.subr.mxu0 0.0
        %504 = vmatpush1.msra.mxu0 0.0
        %505 = vmatprep.subr.mxu0 0.0
        %506 = vmatpush1.msra.mxu0 0.0
        %507 = vmatprep.subr.mxu0 0.0
        %508 = vmatpush1.msra.mxu0 0.0
        %509 = vmatprep.subr.mxu0 0.0
        %510 = vmatpush1.msra.mxu0 0.0
        %511 = vmatprep.subr.mxu0 0.0
        %512 = vmatpush1.msra.mxu0 0.0
        %513 = vmatprep.subr.mxu0 0.0
        %514 = vmatpush1.msra.mxu0 0.0
        %515 = vmatprep.subr.mxu0 0.0
        %516 = vmatpush1.msra.mxu0 0.0
        %517 = vmatprep.subr.mxu0 0.0
        %518 = vmatpush1.msra.mxu0 0.0
        %519 = vmatprep.mubr.f32.mxu0 0.0
        %520 = vmatmul.mubr.f32.gmra.mrb[0].mxu0 %v453
        %v521 = vpop.f32.mrb[0].mxu0
        %v522 = vadd.f32 %v449, %v521
        %v523 = vpop.f32.mrb[0].mxu0
        %524 = vdwg.mxu0
        %v525 = vld [vmem:[%s367] sm:$0x1]
        %v527 = vlaneseq
        %v528 = vshrl.u32 %v527, 7
        %v529 = vsub.s32 0, %v528
        %v530 = vrot.slane %v525, %v529
        %v532 = vadd.f32 %v522, %v530
        %v533 = vld [vmem:[%s360] sm:$0xff]
        %v534 = vmul.f32 %v533, 1e+09
        %536 = vset.pattern.permute.xlu0 0
        %537 = vperm.xlu0 %536, %v534
        %v538 = vpop.permute.xlu0 %537
        %v540 = vadd.f32 %v532, %v538
        %v541 = vsub.f32 0.0, %v540
        %v542 = vmul.f32 %v541, 1.442695
        %v543 = vpow.pop %v542
        %v544 = vadd.f32 %v543, 1.0
        %v545 = vrcp.pop %v544
        %v546 = vsub.f32 %v368, %v369
        %v547 = vmul.f32 %v545, %v546
        %v548 = vadd.f32 %v369, %v547
        %549 = vst.msk [vmem:[%s352] sm:$0xff] %vm378, %v548
        %s550 = sand.u32 %s202, 1
        %s551 = scalar_lea.sflag [#allocation4], %s550
        %s552 = sand.u32 %s202, 1
        %s553 = smul.addr %s552, 8
        %s554 = scalar_lea.vmem [#allocation7], %s553
        // Predicated region
        $region53: #{_attn_gate_impl.1} parent=43 // pred_check
          %p555 = pneg %p212
        $region54: #{_attn_gate_impl.1} parent=43 // pred_check_branch
          %557 = sbr.rel (%p555) target = $region56
        $region55: #{_attn_gate_impl.1} parent=43 // pred_region
          %s559 = ssub.s32 128, 128
          %560 = vsyncadd %s551, %s559
          %s561 = sadd.s32 %s28, %s29
          %s562 = smul.addr %s561, 128
          %s563 = scalar_lea.hbm %s6, %s562
          %s565 = sshll.u32 %s554, 4
          %s566 = int_to_ptr.vmem [resolvable:$true] %s565
          %568 = dma.vmem_to_hbm [thread:$0]  %s566, 128, %s563, %s551
        $region56: #{_attn_gate_impl.1} parent=43 // pred_fallthru
          _
      $region44: #{_attn_gate_impl.1} parent=5 // pred_fallthru
        _
      %p569 = scmp.le.s32.totalorder 2, %s19
      // Predicated region
      $region57: #{_attn_gate_impl.1} parent=5 // pred_check
        %p570 = pneg %p569
      $region58: #{_attn_gate_impl.1} parent=5 // pred_check_branch
        %572 = sbr.rel (%p570) target = $region60
      $region59: #{_attn_gate_impl.1} parent=5 // pred_region
        %s573 = ssub.s32 %s19, 2
        // Predicated region
        $region61: #{_attn_gate_impl.1} parent=59 // pred_check
          %p574 = pneg %p218
        $region62: #{_attn_gate_impl.1} parent=59 // pred_check_branch
          %576 = sbr.rel (%p574) target = $region64
        $region63: #{_attn_gate_impl.1} parent=59 // pred_region
          %s577 = sand.u32 %s203, 1
          %s578 = scalar_lea.sflag [#allocation4], %s577
          %s579 = sand.u32 %s203, 1
          %s580 = smul.addr %s579, 8
          %s581 = scalar_lea.vmem [#allocation7], %s580
          %582 = dma.done %s578, 128
        $region64: #{_attn_gate_impl.1} parent=59 // pred_fallthru
          _
      $region60: #{_attn_gate_impl.1} parent=5 // pred_fallthru
        _
    $region6: #{_attn_gate_impl.1} parent=1 // loop_footer
      %s23 = sadd.s32 1, %s19
    $region7: #{_attn_gate_impl.1} parent=1 // loop_footer_branch
      %18 = sbr.rel target = $region3
    $region8: #{_attn_gate_impl.1} parent=1 // loop_exit
      _
    %583 = vsyncpa [#allocation3], 1
    %s584 = scalar_lea.sflag [#allocation3], 1
    %585 = vsyncpa %s584, 1
    %586 = vsyncpa [#allocation6], 1
    %587 = vsyncpa [#allocation4], 1
    %s588 = scalar_lea.sflag [#allocation4], 1
    %589 = vsyncpa %s588, 1

</llo_original>
